<compile_context>
chip_gen: v5e
topology: v5e:2x2
jax: 0.10.0
libtpu: 0.0.40
codegen_flags: <defaults>
</compile_context>

<pallas_src>
import math
from functools import partial

import jax
import jax.numpy as jnp
from jax.experimental import pallas as pl
from jax.experimental.pallas import tpu as pltpu


_LN_EPS = 1e-5


def _pick_tm(M, cap=1024):
    """Row-tile size: full M when small, else a 1024-row (8-aligned) tile."""
    return M if M <= cap else cap


# ----------------------------------------------------------------------------
# Pallas kernels
# ----------------------------------------------------------------------------

def _qkv_proj_kernel(x_ref, wq_ref, bq_ref, wk_ref, bk_ref, wv_ref, bv_ref,
                     q_ref, k_ref, v_ref):
    # Three bf16 MXU matmuls sharing one staged x tile; K/V emitted in bf16.
    x = x_ref[...].astype(jnp.bfloat16)
    q = jnp.dot(x, wq_ref[...], preferred_element_type=jnp.float32) + bq_ref[...]
    k = jnp.dot(x, wk_ref[...], preferred_element_type=jnp.float32) + bk_ref[...]
    v = jnp.dot(x, wv_ref[...], preferred_element_type=jnp.float32) + bv_ref[...]
    q_ref[...] = q.astype(q_ref.dtype)   # f32 (feeds the sparse-sample einsum)
    k_ref[...] = k.astype(k_ref.dtype)   # bf16
    v_ref[...] = v.astype(v_ref.dtype)   # bf16


def qkv_projection(x, wq, bq, wk, bk, wv, bv):
    """x:(M,H) -> (Q f32 (M,H), K bf16 (M,H), V bf16 (M,H)). Row-tiled."""
    M, K = x.shape
    N = wq.shape[1]
    tm = _pick_tm(M)
    row = lambda i: (i, 0)
    full = lambda i: (0, 0)
    return pl.pallas_call(
        _qkv_proj_kernel,
        out_shape=(jax.ShapeDtypeStruct((M, N), jnp.float32),
                   jax.ShapeDtypeStruct((M, N), jnp.bfloat16),
                   jax.ShapeDtypeStruct((M, N), jnp.bfloat16)),
        grid=(pl.cdiv(M, tm),),
        in_specs=[
            pl.BlockSpec((tm, K), row),
            pl.BlockSpec((K, N), full), pl.BlockSpec((1, N), full),
            pl.BlockSpec((K, N), full), pl.BlockSpec((1, N), full),
            pl.BlockSpec((K, N), full), pl.BlockSpec((1, N), full),
        ],
        out_specs=(pl.BlockSpec((tm, N), row),
                   pl.BlockSpec((tm, N), row),
                   pl.BlockSpec((tm, N), row)),
        compiler_params=pltpu.CompilerParams(dimension_semantics=("parallel",)),
    )(x, wq, bq.reshape(1, N), wk, bk.reshape(1, N), wv, bv.reshape(1, N))


def _proj_add_ln_kernel(ctx_ref, res_ref, w_ref, b_ref, g_ref, be_ref, o_ref, *, eps):
    # y = ctx @ Wo + bo ; z = residual + y ; out = LayerNorm(z)
    y = jnp.dot(ctx_ref[...].astype(jnp.bfloat16), w_ref[...],
                preferred_element_type=jnp.float32) + b_ref[...]
    z = res_ref[...] + y
    mu = jnp.mean(z, axis=-1, keepdims=True)
    var = jnp.mean((z - mu) * (z - mu), axis=-1, keepdims=True)
    zn = (z - mu) * jax.lax.rsqrt(var + eps)
    o_ref[...] = (zn * g_ref[...] + be_ref[...]).astype(o_ref.dtype)


def proj_add_layernorm(ctx, resid, w, b, gamma, beta, eps=_LN_EPS):
    """LayerNorm(resid + ctx @ w + b).  ctx,resid:(M,H) w:(H,H) bf16."""
    M, K = ctx.shape
    N = w.shape[1]
    tm = _pick_tm(M)
    return pl.pallas_call(
        partial(_proj_add_ln_kernel, eps=eps),
        out_shape=jax.ShapeDtypeStruct((M, N), jnp.float32),
        grid=(pl.cdiv(M, tm),),
        in_specs=[
            pl.BlockSpec((tm, K), lambda i: (i, 0)),
            pl.BlockSpec((tm, N), lambda i: (i, 0)),
            pl.BlockSpec((K, N), lambda i: (0, 0)),
            pl.BlockSpec((1, N), lambda i: (0, 0)),
            pl.BlockSpec((1, N), lambda i: (0, 0)),
            pl.BlockSpec((1, N), lambda i: (0, 0)),
        ],
        out_specs=pl.BlockSpec((tm, N), lambda i: (i, 0)),
        compiler_params=pltpu.CompilerParams(dimension_semantics=("parallel",)),
    )(ctx, resid, w, b.reshape(1, N), gamma.reshape(1, N), beta.reshape(1, N))


def _ffn_add_ln_kernel(x_ref, w1_ref, b1_ref, w2_ref, b2_ref, g_ref, be_ref,
                       o_ref, *, eps):
    # y = relu(x @ W1 + b1) @ W2 + b2 ; out = LayerNorm(x + y)
    x = x_ref[...]
    h = jnp.dot(x.astype(jnp.bfloat16), w1_ref[...],
                preferred_element_type=jnp.float32) + b1_ref[...]
    h = jnp.maximum(h, 0.0)
    y = jnp.dot(h.astype(jnp.bfloat16), w2_ref[...],
                preferred_element_type=jnp.float32) + b2_ref[...]
    z = x + y
    mu = jnp.mean(z, axis=-1, keepdims=True)
    var = jnp.mean((z - mu) * (z - mu), axis=-1, keepdims=True)
    zn = (z - mu) * jax.lax.rsqrt(var + eps)
    o_ref[...] = (zn * g_ref[...] + be_ref[...]).astype(o_ref.dtype)


def ffn_add_layernorm(x, w1, b1, w2, b2, gamma, beta, eps=_LN_EPS):
    """LayerNorm(x + conv2(relu(conv1(x)))); kernel_size=1 convs == linears."""
    M, H = x.shape
    I = w1.shape[1]
    tm = _pick_tm(M)
    return pl.pallas_call(
        partial(_ffn_add_ln_kernel, eps=eps),
        out_shape=jax.ShapeDtypeStruct((M, H), jnp.float32),
        grid=(pl.cdiv(M, tm),),
        in_specs=[
            pl.BlockSpec((tm, H), lambda i: (i, 0)),
            pl.BlockSpec((H, I), lambda i: (0, 0)),
            pl.BlockSpec((1, I), lambda i: (0, 0)),
            pl.BlockSpec((I, H), lambda i: (0, 0)),
            pl.BlockSpec((1, H), lambda i: (0, 0)),
            pl.BlockSpec((1, H), lambda i: (0, 0)),
            pl.BlockSpec((1, H), lambda i: (0, 0)),
        ],
        out_specs=pl.BlockSpec((tm, H), lambda i: (i, 0)),
        compiler_params=pltpu.CompilerParams(dimension_semantics=("parallel",)),
    )(x, w1, b1.reshape(1, I), w2, b2.reshape(1, H),
      gamma.reshape(1, H), beta.reshape(1, H))


def _layernorm_kernel(x_ref, g_ref, b_ref, o_ref, *, eps):
    z = x_ref[...]
    mu = jnp.mean(z, axis=-1, keepdims=True)
    var = jnp.mean((z - mu) * (z - mu), axis=-1, keepdims=True)
    zn = (z - mu) * jax.lax.rsqrt(var + eps)
    o_ref[...] = (zn * g_ref[...] + b_ref[...]).astype(o_ref.dtype)


def layernorm(x, gamma, beta, eps=_LN_EPS):
    """Plain LayerNorm over the last dim."""
    M, H = x.shape
    tm = _pick_tm(M)
    return pl.pallas_call(
        partial(_layernorm_kernel, eps=eps),
        out_shape=jax.ShapeDtypeStruct((M, H), jnp.float32),
        grid=(pl.cdiv(M, tm),),
        in_specs=[
            pl.BlockSpec((tm, H), lambda i: (i, 0)),
            pl.BlockSpec((1, H), lambda i: (0, 0)),
            pl.BlockSpec((1, H), lambda i: (0, 0)),
        ],
        out_specs=pl.BlockSpec((tm, H), lambda i: (i, 0)),
        compiler_params=pltpu.CompilerParams(dimension_semantics=("parallel",)),
    )(x, gamma.reshape(1, H), beta.reshape(1, H))


def _attn_core_kernel(q_ref, k_ref, v_ref, o_ref, *, scale, n_heads, head_dim):
    # q_ref: (1, H, u, D) bf16 ; k_ref/v_ref: (1, Lk, H*D) bf16 ;
    # o_ref: (1, u, H*D) f32.  All heads of one batch element per grid step.
    # Per-head results are written with static lane-slice stores (no concat),
    # so only one head's activations are live at a time.
    for h in range(n_heads):                              # static unroll
        qh = q_ref[0, h]                                  # (u, D) bf16
        kh = k_ref[0, :, h * head_dim:(h + 1) * head_dim]  # (Lk, D) bf16
        vh = v_ref[0, :, h * head_dim:(h + 1) * head_dim]  # (Lk, D) bf16
        s = jax.lax.dot_general(qh, kh, (((1,), (1,)), ((), ())),
                                preferred_element_type=jnp.float32) * scale
        s = s - jnp.max(s, axis=-1, keepdims=True)        # f32 softmax stats
        p = jnp.exp(s)
        p = p * pl.reciprocal(jnp.sum(p, axis=-1, keepdims=True), approx=True)
        out_h = jnp.dot(p.astype(jnp.bfloat16), vh,
                        preferred_element_type=jnp.float32)
        o_ref[0, :, h * head_dim:(h + 1) * head_dim] = out_h.astype(o_ref.dtype)


def attn_core(q_red, k_flat, v_flat, scale, n_heads):
    """q_red:(B,H,u,D) bf16  k_flat,v_flat:(B,Lk,H*D) bf16 -> (B,u,H*D) f32."""
    B, H, u, D = q_red.shape
    L_K = k_flat.shape[1]
    hid = H * D
    # TODO(synk): if L_K grows, tile the Lk axis ("arbitrary" grid axis) with an
    # online-softmax accumulator; and with D>=128 add a second "parallel" grid
    # axis over heads so both v7x TensorCores are fed when B is small.
    return pl.pallas_call(
        partial(_attn_core_kernel, scale=scale, n_heads=n_heads, head_dim=D),
        out_shape=jax.ShapeDtypeStruct((B, u, hid), jnp.float32),
        grid=(B,),
        in_specs=[
            pl.BlockSpec((1, H, u, D), lambda b: (b, 0, 0, 0)),
            pl.BlockSpec((1, L_K, hid), lambda b: (b, 0, 0)),
            pl.BlockSpec((1, L_K, hid), lambda b: (b, 0, 0)),
        ],
        out_specs=pl.BlockSpec((1, u, hid), lambda b: (b, 0, 0)),
        compiler_params=pltpu.CompilerParams(dimension_semantics=("parallel",)),
    )(q_red, k_flat, v_flat)


# ----------------------------------------------------------------------------
# ProbAttention (mask_flag=False) — glue + Pallas core
# ----------------------------------------------------------------------------

def prob_attention(q_blhd, k_flat, v_flat, n_heads, factor, rng_key):
    """q:(B,L,H,D) f32  k_flat,v_flat:(B,L,H*D) bf16 -> context (B*L, H*D) f32."""
    B, L_Q, H, D = q_blhd.shape
    L_K = k_flat.shape[1]

    U_part = min(factor * int(math.ceil(math.log(L_K))), L_K)
    u = min(factor * int(math.ceil(math.log(L_Q))), L_Q)

    k_blhd = k_flat.reshape(B, L_K, H, D)
    v_blhd = v_flat.reshape(B, L_K, H, D)

    # ---- sparse-query selection machinery (data-dependent, plain JAX glue) ----
    # TODO(synk): jax.random instead of torch RNG stream (same distribution).
    index_sample = jax.random.randint(rng_key, (L_Q, U_part), 0, L_K)
    K_sample = k_blhd[:, index_sample, :, :]                    # (B,L_Q,U,H,D)
    Q_K_sample = jnp.einsum('blhd,blshd->blhs', q_blhd, K_sample)   # f32
    M_meas = jnp.max(Q_K_sample, axis=-1) - jnp.sum(Q_K_sample, axis=-1) / L_K
    M_meas = jnp.transpose(M_meas, (0, 2, 1))                   # (B,H,L_Q) tiny
    _, M_top = jax.lax.top_k(M_meas, u)                         # (B,H,u)

    b_idx = jnp.arange(B)[:, None, None]
    h_idx = jnp.arange(H)[None, :, None]
    q_red = q_blhd[b_idx, M_top, h_idx, :]                      # (B,H,u,D)

    # ---- hot path: scores * scale, softmax, attn @ V (Pallas, bf16 MXU) ----
    scale = 1.0 / math.sqrt(D)
    attn_out = attn_core(q_red.astype(jnp.bfloat16), k_flat, v_flat,
                         scale, n_heads)                        # (B,u,H*D) f32

    # ---- initial context = per-head mean(V), scatter attn rows at M_top ----
    v_mean = jnp.mean(v_blhd.astype(jnp.float32), axis=1)       # (B,H,D) f32
    context = jnp.broadcast_to(v_mean[:, None, :, :], (B, L_Q, H, D))
    M_top_t = jnp.transpose(M_top, (0, 2, 1))                   # (B,u,H) tiny
    # TODO(synk): fold this scatter into proj_add_layernorm via scalar prefetch
    # + input_output_aliases to avoid one full HBM round-trip at scale.
    context = context.at[b_idx, M_top_t, jnp.arange(H)[None, None, :], :].set(
        attn_out.reshape(B, u, H, D))
    return context.reshape(B * L_Q, H * D)


# ----------------------------------------------------------------------------
# Encoder layer / Encoder
# ----------------------------------------------------------------------------

def encoder_layer(x, p, n_heads, factor, rng_key):
    B, L, hidden = x.shape
    D = hidden // n_heads
    x2 = x.reshape(B * L, hidden)

    # Q/K/V projection: one kernel, K/V emitted directly in bf16.
    q2, k2, v2 = qkv_projection(x2, p['wq'], p['bq'], p['wk'], p['bk'],
                                p['wv'], p['bv'])
    q = q2.reshape(B, L, n_heads, D)
    k_flat = k2.reshape(B, L, hidden)
    v_flat = v2.reshape(B, L, hidden)

    ctx = prob_attention(q, k_flat, v_flat, n_heads, factor, rng_key)  # (B*L, hidden)

    # fused: out-projection + residual + LayerNorm1   (dropout p = 0.0)
    x1 = proj_add_layernorm(ctx, x2, p['wo'], p['bo'], *p['ln1'])

    # fused: conv1(relu) + conv2 + residual + LayerNorm2
    out2 = ffn_add_layernorm(x1, p['w1'], p['b1'], p['w2'], p['b2'], *p['ln2'])
    return out2.reshape(B, L, hidden)


def encoder_forward(x, layers, final_ln, n_heads, factor, rng_key):
    # NB: the PyTorch Encoder.forward zips over conv_layers but never calls
    # them, so all n_layers attention layers run sequentially, then LayerNorm.
    keys = jax.random.split(rng_key, len(layers))
    for p, lk in zip(layers, keys):
        x = encoder_layer(x, p, n_heads, factor, lk)
    B, L, hidden = x.shape
    x2 = layernorm(x.reshape(B * L, hidden), *final_ln)
    return x2.reshape(B, L, hidden)


# ----------------------------------------------------------------------------
# Deterministic parameter init (synthetic; shapes from the module's __init__).
# Matmul weights are stored in bf16 (no per-forward convert); biases/LN in f32.
# ----------------------------------------------------------------------------

def _dense(key, fan_in, fan_out):
    k1, k2 = jax.random.split(key)
    w = jax.random.normal(k1, (fan_in, fan_out), jnp.float32) / math.sqrt(fan_in)
    b = 0.01 * jax.random.normal(k2, (fan_out,), jnp.float32)
    return w.astype(jnp.bfloat16), b


def init_params(key, hidden_dim, inter_dim, n_layers):
    layer_keys = jax.random.split(key, n_layers)
    layers = []
    for lk in layer_keys:
        ks = jax.random.split(lk, 6)
        wq, bq = _dense(ks[0], hidden_dim, hidden_dim)
        wk, bk = _dense(ks[1], hidden_dim, hidden_dim)
        wv, bv = _dense(ks[2], hidden_dim, hidden_dim)
        wo, bo = _dense(ks[3], hidden_dim, hidden_dim)
        w1, b1 = _dense(ks[4], hidden_dim, inter_dim)
        w2, b2 = _dense(ks[5], inter_dim, hidden_dim)
        layers.append({
            'wq': wq, 'bq': bq, 'wk': wk, 'bk': bk, 'wv': wv, 'bv': bv,
            'wo': wo, 'bo': bo,
            'w1': w1, 'b1': b1,
            'w2': w2, 'b2': b2,
            'ln1': (jnp.ones(hidden_dim, jnp.float32), jnp.zeros(hidden_dim, jnp.float32)),
            'ln2': (jnp.ones(hidden_dim, jnp.float32), jnp.zeros(hidden_dim, jnp.float32)),
        })
    final_ln = (jnp.ones(hidden_dim, jnp.float32), jnp.zeros(hidden_dim, jnp.float32))
    return layers, final_ln


# ----------------------------------------------------------------------------

if __name__ == "__main__":
    B, L = 2, 8
    hidden_dim, inter_dim, n_layers, n_heads = 32, 64, 2, 4
    factor = 5

    key = jax.random.PRNGKey(0)
    kx, kp, ks = jax.random.split(key, 3)

    x = jax.random.normal(kx, (B, L, hidden_dim), jnp.float32)
    layers, final_ln = init_params(kp, hidden_dim, inter_dim, n_layers)

    fwd = jax.jit(partial(encoder_forward, n_heads=n_heads, factor=factor))
    out = fwd(x, layers, final_ln, rng_key=ks)
    out = jax.block_until_ready(out)
    assert out.shape == (B, L, hidden_dim)
    assert bool(jnp.all(jnp.isfinite(out)))
    print("KERNEL_OK")
</pallas_src>

<mosaic_0001>
module attributes {stable_mosaic.version = 11 : i64} {
  func.func @_qkv_proj_kernel(%arg0: i32, %arg1: memref<16x32xf32, #tpu.memory_space<vmem>>, %arg2: memref<32x32xbf16, #tpu.memory_space<vmem>>, %arg3: memref<1x32xf32, #tpu.memory_space<vmem>>, %arg4: memref<32x32xbf16, #tpu.memory_space<vmem>>, %arg5: memref<1x32xf32, #tpu.memory_space<vmem>>, %arg6: memref<32x32xbf16, #tpu.memory_space<vmem>>, %arg7: memref<1x32xf32, #tpu.memory_space<vmem>>, %arg8: memref<16x32xf32, #tpu.memory_space<vmem>>, %arg9: memref<16x32xbf16, #tpu.memory_space<vmem>>, %arg10: memref<16x32xbf16, #tpu.memory_space<vmem>>) attributes {dimension_semantics = [#tpu.dimension_semantics<parallel>], iteration_bounds = array<i64: 1>, scalar_prefetch = 0 : i64, scratch_operands = 0 : i64, tpu.core_type = #tpu.core_type<tc>, window_params = [{transform_indices = @transform_0, window_bounds = array<i64: 16, 32>}, {pipeline_mode = #tpu.pipeline_mode<synchronous>, transform_indices = @transform_1, window_bounds = array<i64: 32, 32>}, {pipeline_mode = #tpu.pipeline_mode<synchronous>, transform_indices = @transform_2, window_bounds = array<i64: 1, 32>}, {pipeline_mode = #tpu.pipeline_mode<synchronous>, transform_indices = @transform_3, window_bounds = array<i64: 32, 32>}, {pipeline_mode = #tpu.pipeline_mode<synchronous>, transform_indices = @transform_4, window_bounds = array<i64: 1, 32>}, {pipeline_mode = #tpu.pipeline_mode<synchronous>, transform_indices = @transform_5, window_bounds = array<i64: 32, 32>}, {pipeline_mode = #tpu.pipeline_mode<synchronous>, transform_indices = @transform_6, window_bounds = array<i64: 1, 32>}, {transform_indices = @transform_7, window_bounds = array<i64: 16, 32>}, {transform_indices = @transform_8, window_bounds = array<i64: 16, 32>}, {transform_indices = @transform_9, window_bounds = array<i64: 16, 32>}]} {
    %c0 = arith.constant 0 : index
    %c0_0 = arith.constant 0 : index
    %0 = vector.load %arg1[%c0, %c0_0] : memref<16x32xf32, #tpu.memory_space<vmem>>, vector<16x32xf32>
    %1 = arith.truncf %0 : vector<16x32xf32> to vector<16x32xbf16>
    %c0_1 = arith.constant 0 : index
    %c0_2 = arith.constant 0 : index
    %2 = vector.load %arg2[%c0_1, %c0_2] : memref<32x32xbf16, #tpu.memory_space<vmem>>, vector<32x32xbf16>
    %cst = arith.constant dense<0.000000e+00> : vector<16x32xf32>
    %3 = tpu.matmul %1, %2, %cst {dimension_numbers = #tpu.dot_dimension_numbers<[1], [0], [0], [1], [0, 0, 1, 1], [], []>} : vector<16x32xbf16>, vector<32x32xbf16>, vector<16x32xf32> -> vector<16x32xf32>
    %c0_3 = arith.constant 0 : index
    %c0_4 = arith.constant 0 : index
    %4 = vector.load %arg3[%c0_3, %c0_4] : memref<1x32xf32, #tpu.memory_space<vmem>>, vector<1x32xf32>
    %5 = vector.broadcast %4 : vector<1x32xf32> to vector<16x32xf32>
    %6 = arith.addf %3, %5 : vector<16x32xf32>
    %c0_5 = arith.constant 0 : index
    %c0_6 = arith.constant 0 : index
    %7 = vector.load %arg4[%c0_5, %c0_6] : memref<32x32xbf16, #tpu.memory_space<vmem>>, vector<32x32xbf16>
    %cst_7 = arith.constant dense<0.000000e+00> : vector<16x32xf32>
    %8 = tpu.matmul %1, %7, %cst_7 {dimension_numbers = #tpu.dot_dimension_numbers<[1], [0], [0], [1], [0, 0, 1, 1], [], []>} : vector<16x32xbf16>, vector<32x32xbf16>, vector<16x32xf32> -> vector<16x32xf32>
    %c0_8 = arith.constant 0 : index
    %c0_9 = arith.constant 0 : index
    %9 = vector.load %arg5[%c0_8, %c0_9] : memref<1x32xf32, #tpu.memory_space<vmem>>, vector<1x32xf32>
    %10 = vector.broadcast %9 : vector<1x32xf32> to vector<16x32xf32>
    %11 = arith.addf %8, %10 : vector<16x32xf32>
    %c0_10 = arith.constant 0 : index
    %c0_11 = arith.constant 0 : index
    %12 = vector.load %arg6[%c0_10, %c0_11] : memref<32x32xbf16, #tpu.memory_space<vmem>>, vector<32x32xbf16>
    %cst_12 = arith.constant dense<0.000000e+00> : vector<16x32xf32>
    %13 = tpu.matmul %1, %12, %cst_12 {dimension_numbers = #tpu.dot_dimension_numbers<[1], [0], [0], [1], [0, 0, 1, 1], [], []>} : vector<16x32xbf16>, vector<32x32xbf16>, vector<16x32xf32> -> vector<16x32xf32>
    %c0_13 = arith.constant 0 : index
    %c0_14 = arith.constant 0 : index
    %14 = vector.load %arg7[%c0_13, %c0_14] : memref<1x32xf32, #tpu.memory_space<vmem>>, vector<1x32xf32>
    %15 = vector.broadcast %14 : vector<1x32xf32> to vector<16x32xf32>
    %16 = arith.addf %13, %15 : vector<16x32xf32>
    %c0_15 = arith.constant 0 : index
    %c0_16 = arith.constant 0 : index
    %17 = vector.load %arg8[%c0_15, %c0_16] : memref<16x32xf32, #tpu.memory_space<vmem>>, vector<16x32xf32>
    tpu.vector_store %arg8[%c0_15, %c0_16], %6 {strides = array<i32>} : memref<16x32xf32, #tpu.memory_space<vmem>>, vector<16x32xf32>,
    %18 = arith.truncf %11 : vector<16x32xf32> to vector<16x32xbf16>
    %c0_17 = arith.constant 0 : index
    %c0_18 = arith.constant 0 : index
    %19 = vector.load %arg9[%c0_17, %c0_18] : memref<16x32xbf16, #tpu.memory_space<vmem>>, vector<16x32xbf16>
    tpu.vector_store %arg9[%c0_17, %c0_18], %18 {strides = array<i32>} : memref<16x32xbf16, #tpu.memory_space<vmem>>, vector<16x32xbf16>,
    %20 = arith.truncf %16 : vector<16x32xf32> to vector<16x32xbf16>
    %c0_19 = arith.constant 0 : index
    %c0_20 = arith.constant 0 : index
    %21 = vector.load %arg10[%c0_19, %c0_20] : memref<16x32xbf16, #tpu.memory_space<vmem>>, vector<16x32xbf16>
    tpu.vector_store %arg10[%c0_19, %c0_20], %20 {strides = array<i32>} : memref<16x32xbf16, #tpu.memory_space<vmem>>, vector<16x32xbf16>,
    return
  }
  func.func @transform_0(%arg0: i32) -> (i32, i32) {
    %c0_i32 = arith.constant 0 : i32
    %c0_i32_0 = arith.constant 0 : i32
    return %arg0, %c0_i32 : i32, i32
  }
  func.func @transform_1(%arg0: i32) -> (i32, i32) {
    %c0_i32 = arith.constant 0 : i32
    %c0_i32_0 = arith.constant 0 : i32
    %c0_i32_1 = arith.constant 0 : i32
    return %c0_i32, %c0_i32_0 : i32, i32
  }
  func.func @transform_2(%arg0: i32) -> (i32, i32) {
    %c0_i32 = arith.constant 0 : i32
    %c0_i32_0 = arith.constant 0 : i32
    %c0_i32_1 = arith.constant 0 : i32
    return %c0_i32, %c0_i32_0 : i32, i32
  }
  func.func @transform_3(%arg0: i32) -> (i32, i32) {
    %c0_i32 = arith.constant 0 : i32
    %c0_i32_0 = arith.constant 0 : i32
    %c0_i32_1 = arith.constant 0 : i32
    return %c0_i32, %c0_i32_0 : i32, i32
  }
  func.func @transform_4(%arg0: i32) -> (i32, i32) {
    %c0_i32 = arith.constant 0 : i32
    %c0_i32_0 = arith.constant 0 : i32
    %c0_i32_1 = arith.constant 0 : i32
    return %c0_i32, %c0_i32_0 : i32, i32
  }
  func.func @transform_5(%arg0: i32) -> (i32, i32) {
    %c0_i32 = arith.constant 0 : i32
    %c0_i32_0 = arith.constant 0 : i32
    %c0_i32_1 = arith.constant 0 : i32
    return %c0_i32, %c0_i32_0 : i32, i32
  }
  func.func @transform_6(%arg0: i32) -> (i32, i32) {
    %c0_i32 = arith.constant 0 : i32
    %c0_i32_0 = arith.constant 0 : i32
    %c0_i32_1 = arith.constant 0 : i32
    return %c0_i32, %c0_i32_0 : i32, i32
  }
  func.func @transform_7(%arg0: i32) -> (i32, i32) {
    %c0_i32 = arith.constant 0 : i32
    %c0_i32_0 = arith.constant 0 : i32
    return %arg0, %c0_i32 : i32, i32
  }
  func.func @transform_8(%arg0: i32) -> (i32, i32) {
    %c0_i32 = arith.constant 0 : i32
    %c0_i32_0 = arith.constant 0 : i32
    return %arg0, %c0_i32 : i32, i32
  }
  func.func @transform_9(%arg0: i32) -> (i32, i32) {
    %c0_i32 = arith.constant 0 : i32
    %c0_i32_0 = arith.constant 0 : i32
    return %arg0, %c0_i32 : i32, i32
  }
}

module attributes {stable_mosaic.version = 11 : i64} {
  func.func @_attn_core_kernel(%arg0: i32, %arg1: memref<1x4x8x8xbf16, #tpu.memory_space<vmem>>, %arg2: memref<1x8x32xbf16, #tpu.memory_space<vmem>>, %arg3: memref<1x8x32xbf16, #tpu.memory_space<vmem>>, %arg4: memref<1x8x32xf32, #tpu.memory_space<vmem>>) attributes {dimension_semantics = [#tpu.dimension_semantics<parallel>], iteration_bounds = array<i64: 2>, scalar_prefetch = 0 : i64, scratch_operands = 0 : i64, tpu.core_type = #tpu.core_type<tc>, window_params = [{transform_indices = @transform_0, window_bounds = array<i64: 1, 4, 8, 8>}, {transform_indices = @transform_1, window_bounds = array<i64: 1, 8, 32>}, {transform_indices = @transform_2, window_bounds = array<i64: 1, 8, 32>}, {transform_indices = @transform_3, window_bounds = array<i64: 1, 8, 32>}]} {
    %c0 = arith.constant 0 : index
    %c0_0 = arith.constant 0 : index
    %c0_1 = arith.constant 0 : index
    %c0_2 = arith.constant 0 : index
    %0 = vector.load %arg1[%c0, %c0_0, %c0_1, %c0_2] : memref<1x4x8x8xbf16, #tpu.memory_space<vmem>>, vector<1x1x8x8xbf16>
    %1 = vector.shape_cast %0 : vector<1x1x8x8xbf16> to vector<8x8xbf16>
    %c0_3 = arith.constant 0 : index
    %c0_4 = arith.constant 0 : index
    %c0_5 = arith.constant 0 : index
    %2 = vector.load %arg2[%c0_3, %c0_4, %c0_5] : memref<1x8x32xbf16, #tpu.memory_space<vmem>>, vector<1x8x8xbf16>
    %3 = vector.shape_cast %2 : vector<1x8x8xbf16> to vector<8x8xbf16>
    %c0_6 = arith.constant 0 : index
    %c0_7 = arith.constant 0 : index
    %c0_8 = arith.constant 0 : index
    %4 = vector.load %arg3[%c0_6, %c0_7, %c0_8] : memref<1x8x32xbf16, #tpu.memory_space<vmem>>, vector<1x8x8xbf16>
    %5 = vector.shape_cast %4 : vector<1x8x8xbf16> to vector<8x8xbf16>
    %cst = arith.constant dense<0.000000e+00> : vector<8x8xf32>
    %6 = tpu.matmul %1, %3, %cst {dimension_numbers = #tpu.dot_dimension_numbers<[1], [1], [0], [0], [0, 0, 1, 0], [], []>} : vector<8x8xbf16>, vector<8x8xbf16>, vector<8x8xf32> -> vector<8x8xf32>
    %cst_9 = arith.constant 0.353553385 : f32
    %7 = vector.broadcast %cst_9 : f32 to vector<8x8xf32>
    %8 = arith.mulf %6, %7 : vector<8x8xf32>
    %cst_10 = arith.constant dense<0xFF800000> : vector<8xf32>
    %9 = vector.multi_reduction <maximumf>, %8, %cst_10 [1] : vector<8x8xf32> to vector<8xf32>
    %10 = vector.shape_cast %9 : vector<8xf32> to vector<8x1xf32>
    %11 = vector.broadcast %10 : vector<8x1xf32> to vector<8x8xf32>
    %12 = arith.subf %8, %11 : vector<8x8xf32>
    %13 = math.exp %12 : vector<8x8xf32>
    %cst_11 = arith.constant dense<0.000000e+00> : vector<8xf32>
    %14 = vector.multi_reduction <add>, %13, %cst_11 [1] : vector<8x8xf32> to vector<8xf32>
    %15 = vector.shape_cast %14 : vector<8xf32> to vector<8x1xf32>
    %16 = tpu.reciprocal %15 {approx = true} : vector<8x1xf32> -> vector<8x1xf32>
    %17 = vector.broadcast %16 : vector<8x1xf32> to vector<8x8xf32>
    %18 = arith.mulf %13, %17 : vector<8x8xf32>
    %19 = arith.truncf %18 : vector<8x8xf32> to vector<8x8xbf16>
    %cst_12 = arith.constant dense<0.000000e+00> : vector<8x8xf32>
    %20 = tpu.matmul %19, %5, %cst_12 {dimension_numbers = #tpu.dot_dimension_numbers<[1], [0], [0], [1], [0, 0, 1, 1], [], []>} : vector<8x8xbf16>, vector<8x8xbf16>, vector<8x8xf32> -> vector<8x8xf32>
    %c0_13 = arith.constant 0 : index
    %c0_14 = arith.constant 0 : index
    %c0_15 = arith.constant 0 : index
    %21 = vector.load %arg4[%c0_13, %c0_14, %c0_15] : memref<1x8x32xf32, #tpu.memory_space<vmem>>, vector<1x8x8xf32>
    %22 = vector.shape_cast %21 : vector<1x8x8xf32> to vector<8x8xf32>
    %23 = vector.shape_cast %20 : vector<8x8xf32> to vector<1x8x8xf32>
    tpu.vector_store %arg4[%c0_13, %c0_14, %c0_15], %23 {strides = array<i32>} : memref<1x8x32xf32, #tpu.memory_space<vmem>>, vector<1x8x8xf32>,
    %c0_16 = arith.constant 0 : index
    %c1 = arith.constant 1 : index
    %c0_17 = arith.constant 0 : index
    %c0_18 = arith.constant 0 : index
    %24 = vector.load %arg1[%c0_16, %c1, %c0_17, %c0_18] : memref<1x4x8x8xbf16, #tpu.memory_space<vmem>>, vector<1x1x8x8xbf16>
    %25 = vector.shape_cast %24 : vector<1x1x8x8xbf16> to vector<8x8xbf16>
    %c0_19 = arith.constant 0 : index
    %c0_20 = arith.constant 0 : index
    %c8 = arith.constant 8 : index
    %26 = vector.load %arg2[%c0_19, %c0_20, %c8] : memref<1x8x32xbf16, #tpu.memory_space<vmem>>, vector<1x8x8xbf16>
    %27 = vector.shape_cast %26 : vector<1x8x8xbf16> to vector<8x8xbf16>
    %c0_21 = arith.constant 0 : index
    %c0_22 = arith.constant 0 : index
    %c8_23 = arith.constant 8 : index
    %28 = vector.load %arg3[%c0_21, %c0_22, %c8_23] : memref<1x8x32xbf16, #tpu.memory_space<vmem>>, vector<1x8x8xbf16>
    %29 = vector.shape_cast %28 : vector<1x8x8xbf16> to vector<8x8xbf16>
    %cst_24 = arith.constant dense<0.000000e+00> : vector<8x8xf32>
    %30 = tpu.matmul %25, %27, %cst_24 {dimension_numbers = #tpu.dot_dimension_numbers<[1], [1], [0], [0], [0, 0, 1, 0], [], []>} : vector<8x8xbf16>, vector<8x8xbf16>, vector<8x8xf32> -> vector<8x8xf32>
    %cst_25 = arith.constant 0.353553385 : f32
    %31 = vector.broadcast %cst_25 : f32 to vector<8x8xf32>
    %32 = arith.mulf %30, %31 : vector<8x8xf32>
    %cst_26 = arith.constant dense<0xFF800000> : vector<8xf32>
    %33 = vector.multi_reduction <maximumf>, %32, %cst_26 [1] : vector<8x8xf32> to vector<8xf32>
    %34 = vector.shape_cast %33 : vector<8xf32> to vector<8x1xf32>
    %35 = vector.broadcast %34 : vector<8x1xf32> to vector<8x8xf32>
    %36 = arith.subf %32, %35 : vector<8x8xf32>
    %37 = math.exp %36 : vector<8x8xf32>
    %cst_27 = arith.constant dense<0.000000e+00> : vector<8xf32>
    %38 = vector.multi_reduction <add>, %37, %cst_27 [1] : vector<8x8xf32> to vector<8xf32>
    %39 = vector.shape_cast %38 : vector<8xf32> to vector<8x1xf32>
    %40 = tpu.reciprocal %39 {approx = true} : vector<8x1xf32> -> vector<8x1xf32>
    %41 = vector.broadcast %40 : vector<8x1xf32> to vector<8x8xf32>
    %42 = arith.mulf %37, %41 : vector<8x8xf32>
    %43 = arith.truncf %42 : vector<8x8xf32> to vector<8x8xbf16>
    %cst_28 = arith.constant dense<0.000000e+00> : vector<8x8xf32>
    %44 = tpu.matmul %43, %29, %cst_28 {dimension_numbers = #tpu.dot_dimension_numbers<[1], [0], [0], [1], [0, 0, 1, 1], [], []>} : vector<8x8xbf16>, vector<8x8xbf16>, vector<8x8xf32> -> vector<8x8xf32>
    %c0_29 = arith.constant 0 : index
    %c0_30 = arith.constant 0 : index
    %c8_31 = arith.constant 8 : index
    %45 = vector.load %arg4[%c0_29, %c0_30, %c8_31] : memref<1x8x32xf32, #tpu.memory_space<vmem>>, vector<1x8x8xf32>
    %46 = vector.shape_cast %45 : vector<1x8x8xf32> to vector<8x8xf32>
    %47 = vector.shape_cast %44 : vector<8x8xf32> to vector<1x8x8xf32>
    tpu.vector_store %arg4[%c0_29, %c0_30, %c8_31], %47 {strides = array<i32>} : memref<1x8x32xf32, #tpu.memory_space<vmem>>, vector<1x8x8xf32>,
    %c0_32 = arith.constant 0 : index
    %c2 = arith.constant 2 : index
    %c0_33 = arith.constant 0 : index
    %c0_34 = arith.constant 0 : index
    %48 = vector.load %arg1[%c0_32, %c2, %c0_33, %c0_34] : memref<1x4x8x8xbf16, #tpu.memory_space<vmem>>, vector<1x1x8x8xbf16>
    %49 = vector.shape_cast %48 : vector<1x1x8x8xbf16> to vector<8x8xbf16>
    %c0_35 = arith.constant 0 : index
    %c0_36 = arith.constant 0 : index
    %c16 = arith.constant 16 : index
    %50 = vector.load %arg2[%c0_35, %c0_36, %c16] : memref<1x8x32xbf16, #tpu.memory_space<vmem>>, vector<1x8x8xbf16>
    %51 = vector.shape_cast %50 : vector<1x8x8xbf16> to vector<8x8xbf16>
    %c0_37 = arith.constant 0 : index
    %c0_38 = arith.constant 0 : index
    %c16_39 = arith.constant 16 : index
    %52 = vector.load %arg3[%c0_37, %c0_38, %c16_39] : memref<1x8x32xbf16, #tpu.memory_space<vmem>>, vector<1x8x8xbf16>
    %53 = vector.shape_cast %52 : vector<1x8x8xbf16> to vector<8x8xbf16>
    %cst_40 = arith.constant dense<0.000000e+00> : vector<8x8xf32>
    %54 = tpu.matmul %49, %51, %cst_40 {dimension_numbers = #tpu.dot_dimension_numbers<[1], [1], [0], [0], [0, 0, 1, 0], [], []>} : vector<8x8xbf16>, vector<8x8xbf16>, vector<8x8xf32> -> vector<8x8xf32>
    %cst_41 = arith.constant 0.353553385 : f32
    %55 = vector.broadcast %cst_41 : f32 to vector<8x8xf32>
    %56 = arith.mulf %54, %55 : vector<8x8xf32>
    %cst_42 = arith.constant dense<0xFF800000> : vector<8xf32>
    %57 = vector.multi_reduction <maximumf>, %56, %cst_42 [1] : vector<8x8xf32> to vector<8xf32>
    %58 = vector.shape_cast %57 : vector<8xf32> to vector<8x1xf32>
    %59 = vector.broadcast %58 : vector<8x1xf32> to vector<8x8xf32>
    %60 = arith.subf %56, %59 : vector<8x8xf32>
    %61 = math.exp %60 : vector<8x8xf32>
    %cst_43 = arith.constant dense<0.000000e+00> : vector<8xf32>
    %62 = vector.multi_reduction <add>, %61, %cst_43 [1] : vector<8x8xf32> to vector<8xf32>
    %63 = vector.shape_cast %62 : vector<8xf32> to vector<8x1xf32>
    %64 = tpu.reciprocal %63 {approx = true} : vector<8x1xf32> -> vector<8x1xf32>
    %65 = vector.broadcast %64 : vector<8x1xf32> to vector<8x8xf32>
    %66 = arith.mulf %61, %65 : vector<8x8xf32>
    %67 = arith.truncf %66 : vector<8x8xf32> to vector<8x8xbf16>
    %cst_44 = arith.constant dense<0.000000e+00> : vector<8x8xf32>
    %68 = tpu.matmul %67, %53, %cst_44 {dimension_numbers = #tpu.dot_dimension_numbers<[1], [0], [0], [1], [0, 0, 1, 1], [], []>} : vector<8x8xbf16>, vector<8x8xbf16>, vector<8x8xf32> -> vector<8x8xf32>
    %c0_45 = arith.constant 0 : index
    %c0_46 = arith.constant 0 : index
    %c16_47 = arith.constant 16 : index
    %69 = vector.load %arg4[%c0_45, %c0_46, %c16_47] : memref<1x8x32xf32, #tpu.memory_space<vmem>>, vector<1x8x8xf32>
    %70 = vector.shape_cast %69 : vector<1x8x8xf32> to vector<8x8xf32>
    %71 = vector.shape_cast %68 : vector<8x8xf32> to vector<1x8x8xf32>
    tpu.vector_store %arg4[%c0_45, %c0_46, %c16_47], %71 {strides = array<i32>} : memref<1x8x32xf32, #tpu.memory_space<vmem>>, vector<1x8x8xf32>,
    %c0_48 = arith.constant 0 : index
    %c3 = arith.constant 3 : index
    %c0_49 = arith.constant 0 : index
    %c0_50 = arith.constant 0 : index
    %72 = vector.load %arg1[%c0_48, %c3, %c0_49, %c0_50] : memref<1x4x8x8xbf16, #tpu.memory_space<vmem>>, vector<1x1x8x8xbf16>
    %73 = vector.shape_cast %72 : vector<1x1x8x8xbf16> to vector<8x8xbf16>
    %c0_51 = arith.constant 0 : index
    %c0_52 = arith.constant 0 : index
    %c24 = arith.constant 24 : index
    %74 = vector.load %arg2[%c0_51, %c0_52, %c24] : memref<1x8x32xbf16, #tpu.memory_space<vmem>>, vector<1x8x8xbf16>
    %75 = vector.shape_cast %74 : vector<1x8x8xbf16> to vector<8x8xbf16>
    %c0_53 = arith.constant 0 : index
    %c0_54 = arith.constant 0 : index
    %c24_55 = arith.constant 24 : index
    %76 = vector.load %arg3[%c0_53, %c0_54, %c24_55] : memref<1x8x32xbf16, #tpu.memory_space<vmem>>, vector<1x8x8xbf16>
    %77 = vector.shape_cast %76 : vector<1x8x8xbf16> to vector<8x8xbf16>
    %cst_56 = arith.constant dense<0.000000e+00> : vector<8x8xf32>
    %78 = tpu.matmul %73, %75, %cst_56 {dimension_numbers = #tpu.dot_dimension_numbers<[1], [1], [0], [0], [0, 0, 1, 0], [], []>} : vector<8x8xbf16>, vector<8x8xbf16>, vector<8x8xf32> -> vector<8x8xf32>
    %cst_57 = arith.constant 0.353553385 : f32
    %79 = vector.broadcast %cst_57 : f32 to vector<8x8xf32>
    %80 = arith.mulf %78, %79 : vector<8x8xf32>
    %cst_58 = arith.constant dense<0xFF800000> : vector<8xf32>
    %81 = vector.multi_reduction <maximumf>, %80, %cst_58 [1] : vector<8x8xf32> to vector<8xf32>
    %82 = vector.shape_cast %81 : vector<8xf32> to vector<8x1xf32>
    %83 = vector.broadcast %82 : vector<8x1xf32> to vector<8x8xf32>
    %84 = arith.subf %80, %83 : vector<8x8xf32>
    %85 = math.exp %84 : vector<8x8xf32>
    %cst_59 = arith.constant dense<0.000000e+00> : vector<8xf32>
    %86 = vector.multi_reduction <add>, %85, %cst_59 [1] : vector<8x8xf32> to vector<8xf32>
    %87 = vector.shape_cast %86 : vector<8xf32> to vector<8x1xf32>
    %88 = tpu.reciprocal %87 {approx = true} : vector<8x1xf32> -> vector<8x1xf32>
    %89 = vector.broadcast %88 : vector<8x1xf32> to vector<8x8xf32>
    %90 = arith.mulf %85, %89 : vector<8x8xf32>
    %91 = arith.truncf %90 : vector<8x8xf32> to vector<8x8xbf16>
    %cst_60 = arith.constant dense<0.000000e+00> : vector<8x8xf32>
    %92 = tpu.matmul %91, %77, %cst_60 {dimension_numbers = #tpu.dot_dimension_numbers<[1], [0], [0], [1], [0, 0, 1, 1], [], []>} : vector<8x8xbf16>, vector<8x8xbf16>, vector<8x8xf32> -> vector<8x8xf32>
    %c0_61 = arith.constant 0 : index
    %c0_62 = arith.constant 0 : index
    %c24_63 = arith.constant 24 : index
    %93 = vector.load %arg4[%c0_61, %c0_62, %c24_63] : memref<1x8x32xf32, #tpu.memory_space<vmem>>, vector<1x8x8xf32>
    %94 = vector.shape_cast %93 : vector<1x8x8xf32> to vector<8x8xf32>
    %95 = vector.shape_cast %92 : vector<8x8xf32> to vector<1x8x8xf32>
    tpu.vector_store %arg4[%c0_61, %c0_62, %c24_63], %95 {strides = array<i32>} : memref<1x8x32xf32, #tpu.memory_space<vmem>>, vector<1x8x8xf32>,
    return
  }
  func.func @transform_0(%arg0: i32) -> (i32, i32, i32, i32) {
    %c0_i32 = arith.constant 0 : i32
    %c0_i32_0 = arith.constant 0 : i32
    %c0_i32_1 = arith.constant 0 : i32
    %c0_i32_2 = arith.constant 0 : i32
    return %arg0, %c0_i32, %c0_i32_0, %c0_i32_1 : i32, i32, i32, i32
  }
  func.func @transform_1(%arg0: i32) -> (i32, i32, i32) {
    %c0_i32 = arith.constant 0 : i32
    %c0_i32_0 = arith.constant 0 : i32
    %c0_i32_1 = arith.constant 0 : i32
    return %arg0, %c0_i32, %c0_i32_0 : i32, i32, i32
  }
  func.func @transform_2(%arg0: i32) -> (i32, i32, i32) {
    %c0_i32 = arith.constant 0 : i32
    %c0_i32_0 = arith.constant 0 : i32
    %c0_i32_1 = arith.constant 0 : i32
    return %arg0, %c0_i32, %c0_i32_0 : i32, i32, i32
  }
  func.func @transform_3(%arg0: i32) -> (i32, i32, i32) {
    %c0_i32 = arith.constant 0 : i32
    %c0_i32_0 = arith.constant 0 : i32
    %c0_i32_1 = arith.constant 0 : i32
    return %arg0, %c0_i32, %c0_i32_0 : i32, i32, i32
  }
}

module attributes {stable_mosaic.version = 11 : i64} {
  func.func @_proj_add_ln_kernel(%arg0: i32, %arg1: memref<16x32xf32, #tpu.memory_space<vmem>>, %arg2: memref<16x32xf32, #tpu.memory_space<vmem>>, %arg3: memref<32x32xbf16, #tpu.memory_space<vmem>>, %arg4: memref<1x32xf32, #tpu.memory_space<vmem>>, %arg5: memref<1x32xf32, #tpu.memory_space<vmem>>, %arg6: memref<1x32xf32, #tpu.memory_space<vmem>>, %arg7: memref<16x32xf32, #tpu.memory_space<vmem>>) attributes {dimension_semantics = [#tpu.dimension_semantics<parallel>], iteration_bounds = array<i64: 1>, scalar_prefetch = 0 : i64, scratch_operands = 0 : i64, tpu.core_type = #tpu.core_type<tc>, window_params = [{transform_indices = @transform_0, window_bounds = array<i64: 16, 32>}, {transform_indices = @transform_1, window_bounds = array<i64: 16, 32>}, {pipeline_mode = #tpu.pipeline_mode<synchronous>, transform_indices = @transform_2, window_bounds = array<i64: 32, 32>}, {pipeline_mode = #tpu.pipeline_mode<synchronous>, transform_indices = @transform_3, window_bounds = array<i64: 1, 32>}, {pipeline_mode = #tpu.pipeline_mode<synchronous>, transform_indices = @transform_4, window_bounds = array<i64: 1, 32>}, {pipeline_mode = #tpu.pipeline_mode<synchronous>, transform_indices = @transform_5, window_bounds = array<i64: 1, 32>}, {transform_indices = @transform_6, window_bounds = array<i64: 16, 32>}]} {
    %c0 = arith.constant 0 : index
    %c0_0 = arith.constant 0 : index
    %0 = vector.load %arg1[%c0, %c0_0] : memref<16x32xf32, #tpu.memory_space<vmem>>, vector<16x32xf32>
    %1 = arith.truncf %0 : vector<16x32xf32> to vector<16x32xbf16>
    %c0_1 = arith.constant 0 : index
    %c0_2 = arith.constant 0 : index
    %2 = vector.load %arg3[%c0_1, %c0_2] : memref<32x32xbf16, #tpu.memory_space<vmem>>, vector<32x32xbf16>
    %cst = arith.constant dense<0.000000e+00> : vector<16x32xf32>
    %3 = tpu.matmul %1, %2, %cst {dimension_numbers = #tpu.dot_dimension_numbers<[1], [0], [0], [1], [0, 0, 1, 1], [], []>} : vector<16x32xbf16>, vector<32x32xbf16>, vector<16x32xf32> -> vector<16x32xf32>
    %c0_3 = arith.constant 0 : index
    %c0_4 = arith.constant 0 : index
    %4 = vector.load %arg4[%c0_3, %c0_4] : memref<1x32xf32, #tpu.memory_space<vmem>>, vector<1x32xf32>
    %5 = vector.broadcast %4 : vector<1x32xf32> to vector<16x32xf32>
    %6 = arith.addf %3, %5 : vector<16x32xf32>
    %c0_5 = arith.constant 0 : index
    %c0_6 = arith.constant 0 : index
    %7 = vector.load %arg2[%c0_5, %c0_6] : memref<16x32xf32, #tpu.memory_space<vmem>>, vector<16x32xf32>
    %8 = arith.addf %7, %6 : vector<16x32xf32>
    %cst_7 = arith.constant dense<0.000000e+00> : vector<16xf32>
    %9 = vector.multi_reduction <add>, %8, %cst_7 [1] : vector<16x32xf32> to vector<16xf32>
    %10 = vector.shape_cast %9 : vector<16xf32> to vector<16x1xf32>
    %cst_8 = arith.constant 3.200000e+01 : f32
    %11 = vector.broadcast %cst_8 : f32 to vector<16x1xf32>
    %12 = arith.divf %10, %11 : vector<16x1xf32>
    %13 = vector.broadcast %12 : vector<16x1xf32> to vector<16x32xf32>
    %14 = arith.subf %8, %13 : vector<16x32xf32>
    %15 = vector.broadcast %12 : vector<16x1xf32> to vector<16x32xf32>
    %16 = arith.subf %8, %15 : vector<16x32xf32>
    %17 = arith.mulf %14, %16 : vector<16x32xf32>
    %cst_9 = arith.constant dense<0.000000e+00> : vector<16xf32>
    %18 = vector.multi_reduction <add>, %17, %cst_9 [1] : vector<16x32xf32> to vector<16xf32>
    %19 = vector.shape_cast %18 : vector<16xf32> to vector<16x1xf32>
    %cst_10 = arith.constant 3.200000e+01 : f32
    %20 = vector.broadcast %cst_10 : f32 to vector<16x1xf32>
    %21 = arith.divf %19, %20 : vector<16x1xf32>
    %22 = vector.broadcast %12 : vector<16x1xf32> to vector<16x32xf32>
    %23 = arith.subf %8, %22 : vector<16x32xf32>
    %cst_11 = arith.constant 9.99999974E-6 : f32
    %24 = vector.broadcast %cst_11 : f32 to vector<16x1xf32>
    %25 = arith.addf %21, %24 : vector<16x1xf32>
    %26 = math.rsqrt %25 : vector<16x1xf32>
    %27 = vector.broadcast %26 : vector<16x1xf32> to vector<16x32xf32>
    %28 = arith.mulf %23, %27 : vector<16x32xf32>
    %c0_12 = arith.constant 0 : index
    %c0_13 = arith.constant 0 : index
    %29 = vector.load %arg5[%c0_12, %c0_13] : memref<1x32xf32, #tpu.memory_space<vmem>>, vector<1x32xf32>
    %30 = vector.broadcast %29 : vector<1x32xf32> to vector<16x32xf32>
    %31 = arith.mulf %28, %30 : vector<16x32xf32>
    %c0_14 = arith.constant 0 : index
    %c0_15 = arith.constant 0 : index
    %32 = vector.load %arg6[%c0_14, %c0_15] : memref<1x32xf32, #tpu.memory_space<vmem>>, vector<1x32xf32>
    %33 = vector.broadcast %32 : vector<1x32xf32> to vector<16x32xf32>
    %34 = arith.addf %31, %33 : vector<16x32xf32>
    %c0_16 = arith.constant 0 : index
    %c0_17 = arith.constant 0 : index
    %35 = vector.load %arg7[%c0_16, %c0_17] : memref<16x32xf32, #tpu.memory_space<vmem>>, vector<16x32xf32>
    tpu.vector_store %arg7[%c0_16, %c0_17], %34 {strides = array<i32>} : memref<16x32xf32, #tpu.memory_space<vmem>>, vector<16x32xf32>,
    return
  }
  func.func @transform_0(%arg0: i32) -> (i32, i32) {
    %c0_i32 = arith.constant 0 : i32
    %c0_i32_0 = arith.constant 0 : i32
    return %arg0, %c0_i32 : i32, i32
  }
  func.func @transform_1(%arg0: i32) -> (i32, i32) {
    %c0_i32 = arith.constant 0 : i32
    %c0_i32_0 = arith.constant 0 : i32
    return %arg0, %c0_i32 : i32, i32
  }
  func.func @transform_2(%arg0: i32) -> (i32, i32) {
    %c0_i32 = arith.constant 0 : i32
    %c0_i32_0 = arith.constant 0 : i32
    %c0_i32_1 = arith.constant 0 : i32
    return %c0_i32, %c0_i32_0 : i32, i32
  }
  func.func @transform_3(%arg0: i32) -> (i32, i32) {
    %c0_i32 = arith.constant 0 : i32
    %c0_i32_0 = arith.constant 0 : i32
    %c0_i32_1 = arith.constant 0 : i32
    return %c0_i32, %c0_i32_0 : i32, i32
  }
  func.func @transform_4(%arg0: i32) -> (i32, i32) {
    %c0_i32 = arith.constant 0 : i32
    %c0_i32_0 = arith.constant 0 : i32
    %c0_i32_1 = arith.constant 0 : i32
    return %c0_i32, %c0_i32_0 : i32, i32
  }
  func.func @transform_5(%arg0: i32) -> (i32, i32) {
    %c0_i32 = arith.constant 0 : i32
    %c0_i32_0 = arith.constant 0 : i32
    %c0_i32_1 = arith.constant 0 : i32
    return %c0_i32, %c0_i32_0 : i32, i32
  }
  func.func @transform_6(%arg0: i32) -> (i32, i32) {
    %c0_i32 = arith.constant 0 : i32
    %c0_i32_0 = arith.constant 0 : i32
    return %arg0, %c0_i32 : i32, i32
  }
}

module attributes {stable_mosaic.version = 11 : i64} {
  func.func @_ffn_add_ln_kernel(%arg0: i32, %arg1: memref<16x32xf32, #tpu.memory_space<vmem>>, %arg2: memref<32x64xbf16, #tpu.memory_space<vmem>>, %arg3: memref<1x64xf32, #tpu.memory_space<vmem>>, %arg4: memref<64x32xbf16, #tpu.memory_space<vmem>>, %arg5: memref<1x32xf32, #tpu.memory_space<vmem>>, %arg6: memref<1x32xf32, #tpu.memory_space<vmem>>, %arg7: memref<1x32xf32, #tpu.memory_space<vmem>>, %arg8: memref<16x32xf32, #tpu.memory_space<vmem>>) attributes {dimension_semantics = [#tpu.dimension_semantics<parallel>], iteration_bounds = array<i64: 1>, scalar_prefetch = 0 : i64, scratch_operands = 0 : i64, tpu.core_type = #tpu.core_type<tc>, window_params = [{transform_indices = @transform_0, window_bounds = array<i64: 16, 32>}, {pipeline_mode = #tpu.pipeline_mode<synchronous>, transform_indices = @transform_1, window_bounds = array<i64: 32, 64>}, {pipeline_mode = #tpu.pipeline_mode<synchronous>, transform_indices = @transform_2, window_bounds = array<i64: 1, 64>}, {pipeline_mode = #tpu.pipeline_mode<synchronous>, transform_indices = @transform_3, window_bounds = array<i64: 64, 32>}, {pipeline_mode = #tpu.pipeline_mode<synchronous>, transform_indices = @transform_4, window_bounds = array<i64: 1, 32>}, {pipeline_mode = #tpu.pipeline_mode<synchronous>, transform_indices = @transform_5, window_bounds = array<i64: 1, 32>}, {pipeline_mode = #tpu.pipeline_mode<synchronous>, transform_indices = @transform_6, window_bounds = array<i64: 1, 32>}, {transform_indices = @transform_7, window_bounds = array<i64: 16, 32>}]} {
    %c0 = arith.constant 0 : index
    %c0_0 = arith.constant 0 : index
    %0 = vector.load %arg1[%c0, %c0_0] : memref<16x32xf32, #tpu.memory_space<vmem>>, vector<16x32xf32>
    %1 = arith.truncf %0 : vector<16x32xf32> to vector<16x32xbf16>
    %c0_1 = arith.constant 0 : index
    %c0_2 = arith.constant 0 : index
    %2 = vector.load %arg2[%c0_1, %c0_2] : memref<32x64xbf16, #tpu.memory_space<vmem>>, vector<32x64xbf16>
    %cst = arith.constant dense<0.000000e+00> : vector<16x64xf32>
    %3 = tpu.matmul %1, %2, %cst {dimension_numbers = #tpu.dot_dimension_numbers<[1], [0], [0], [1], [0, 0, 1, 1], [], []>} : vector<16x32xbf16>, vector<32x64xbf16>, vector<16x64xf32> -> vector<16x64xf32>
    %c0_3 = arith.constant 0 : index
    %c0_4 = arith.constant 0 : index
    %4 = vector.load %arg3[%c0_3, %c0_4] : memref<1x64xf32, #tpu.memory_space<vmem>>, vector<1x64xf32>
    %5 = vector.broadcast %4 : vector<1x64xf32> to vector<16x64xf32>
    %6 = arith.addf %3, %5 : vector<16x64xf32>
    %cst_5 = arith.constant 0.000000e+00 : f32
    %7 = vector.broadcast %cst_5 : f32 to vector<16x64xf32>
    %8 = arith.maximumf %6, %7 : vector<16x64xf32>
    %9 = arith.truncf %8 : vector<16x64xf32> to vector<16x64xbf16>
    %c0_6 = arith.constant 0 : index
    %c0_7 = arith.constant 0 : index
    %10 = vector.load %arg4[%c0_6, %c0_7] : memref<64x32xbf16, #tpu.memory_space<vmem>>, vector<64x32xbf16>
    %cst_8 = arith.constant dense<0.000000e+00> : vector<16x32xf32>
    %11 = tpu.matmul %9, %10, %cst_8 {dimension_numbers = #tpu.dot_dimension_numbers<[1], [0], [0], [1], [0, 0, 1, 1], [], []>} : vector<16x64xbf16>, vector<64x32xbf16>, vector<16x32xf32> -> vector<16x32xf32>
    %c0_9 = arith.constant 0 : index
    %c0_10 = arith.constant 0 : index
    %12 = vector.load %arg5[%c0_9, %c0_10] : memref<1x32xf32, #tpu.memory_space<vmem>>, vector<1x32xf32>
    %13 = vector.broadcast %12 : vector<1x32xf32> to vector<16x32xf32>
    %14 = arith.addf %11, %13 : vector<16x32xf32>
    %15 = arith.addf %0, %14 : vector<16x32xf32>
    %cst_11 = arith.constant dense<0.000000e+00> : vector<16xf32>
    %16 = vector.multi_reduction <add>, %15, %cst_11 [1] : vector<16x32xf32> to vector<16xf32>
    %17 = vector.shape_cast %16 : vector<16xf32> to vector<16x1xf32>
    %cst_12 = arith.constant 3.200000e+01 : f32
    %18 = vector.broadcast %cst_12 : f32 to vector<16x1xf32>
    %19 = arith.divf %17, %18 : vector<16x1xf32>
    %20 = vector.broadcast %19 : vector<16x1xf32> to vector<16x32xf32>
    %21 = arith.subf %15, %20 : vector<16x32xf32>
    %22 = vector.broadcast %19 : vector<16x1xf32> to vector<16x32xf32>
    %23 = arith.subf %15, %22 : vector<16x32xf32>
    %24 = arith.mulf %21, %23 : vector<16x32xf32>
    %cst_13 = arith.constant dense<0.000000e+00> : vector<16xf32>
    %25 = vector.multi_reduction <add>, %24, %cst_13 [1] : vector<16x32xf32> to vector<16xf32>
    %26 = vector.shape_cast %25 : vector<16xf32> to vector<16x1xf32>
    %cst_14 = arith.constant 3.200000e+01 : f32
    %27 = vector.broadcast %cst_14 : f32 to vector<16x1xf32>
    %28 = arith.divf %26, %27 : vector<16x1xf32>
    %29 = vector.broadcast %19 : vector<16x1xf32> to vector<16x32xf32>
    %30 = arith.subf %15, %29 : vector<16x32xf32>
    %cst_15 = arith.constant 9.99999974E-6 : f32
    %31 = vector.broadcast %cst_15 : f32 to vector<16x1xf32>
    %32 = arith.addf %28, %31 : vector<16x1xf32>
    %33 = math.rsqrt %32 : vector<16x1xf32>
    %34 = vector.broadcast %33 : vector<16x1xf32> to vector<16x32xf32>
    %35 = arith.mulf %30, %34 : vector<16x32xf32>
    %c0_16 = arith.constant 0 : index
    %c0_17 = arith.constant 0 : index
    %36 = vector.load %arg6[%c0_16, %c0_17] : memref<1x32xf32, #tpu.memory_space<vmem>>, vector<1x32xf32>
    %37 = vector.broadcast %36 : vector<1x32xf32> to vector<16x32xf32>
    %38 = arith.mulf %35, %37 : vector<16x32xf32>
    %c0_18 = arith.constant 0 : index
    %c0_19 = arith.constant 0 : index
    %39 = vector.load %arg7[%c0_18, %c0_19] : memref<1x32xf32, #tpu.memory_space<vmem>>, vector<1x32xf32>
    %40 = vector.broadcast %39 : vector<1x32xf32> to vector<16x32xf32>
    %41 = arith.addf %38, %40 : vector<16x32xf32>
    %c0_20 = arith.constant 0 : index
    %c0_21 = arith.constant 0 : index
    %42 = vector.load %arg8[%c0_20, %c0_21] : memref<16x32xf32, #tpu.memory_space<vmem>>, vector<16x32xf32>
    tpu.vector_store %arg8[%c0_20, %c0_21], %41 {strides = array<i32>} : memref<16x32xf32, #tpu.memory_space<vmem>>, vector<16x32xf32>,
    return
  }
  func.func @transform_0(%arg0: i32) -> (i32, i32) {
    %c0_i32 = arith.constant 0 : i32
    %c0_i32_0 = arith.constant 0 : i32
    return %arg0, %c0_i32 : i32, i32
  }
  func.func @transform_1(%arg0: i32) -> (i32, i32) {
    %c0_i32 = arith.constant 0 : i32
    %c0_i32_0 = arith.constant 0 : i32
    %c0_i32_1 = arith.constant 0 : i32
    return %c0_i32, %c0_i32_0 : i32, i32
  }
  func.func @transform_2(%arg0: i32) -> (i32, i32) {
    %c0_i32 = arith.constant 0 : i32
    %c0_i32_0 = arith.constant 0 : i32
    %c0_i32_1 = arith.constant 0 : i32
    return %c0_i32, %c0_i32_0 : i32, i32
  }
  func.func @transform_3(%arg0: i32) -> (i32, i32) {
    %c0_i32 = arith.constant 0 : i32
    %c0_i32_0 = arith.constant 0 : i32
    %c0_i32_1 = arith.constant 0 : i32
    return %c0_i32, %c0_i32_0 : i32, i32
  }
  func.func @transform_4(%arg0: i32) -> (i32, i32) {
    %c0_i32 = arith.constant 0 : i32
    %c0_i32_0 = arith.constant 0 : i32
    %c0_i32_1 = arith.constant 0 : i32
    return %c0_i32, %c0_i32_0 : i32, i32
  }
  func.func @transform_5(%arg0: i32) -> (i32, i32) {
    %c0_i32 = arith.constant 0 : i32
    %c0_i32_0 = arith.constant 0 : i32
    %c0_i32_1 = arith.constant 0 : i32
    return %c0_i32, %c0_i32_0 : i32, i32
  }
  func.func @transform_6(%arg0: i32) -> (i32, i32) {
    %c0_i32 = arith.constant 0 : i32
    %c0_i32_0 = arith.constant 0 : i32
    %c0_i32_1 = arith.constant 0 : i32
    return %c0_i32, %c0_i32_0 : i32, i32
  }
  func.func @transform_7(%arg0: i32) -> (i32, i32) {
    %c0_i32 = arith.constant 0 : i32
    %c0_i32_0 = arith.constant 0 : i32
    return %arg0, %c0_i32 : i32, i32
  }
}

module attributes {stable_mosaic.version = 11 : i64} {
  func.func @_layernorm_kernel(%arg0: i32, %arg1: memref<16x32xf32, #tpu.memory_space<vmem>>, %arg2: memref<1x32xf32, #tpu.memory_space<vmem>>, %arg3: memref<1x32xf32, #tpu.memory_space<vmem>>, %arg4: memref<16x32xf32, #tpu.memory_space<vmem>>) attributes {dimension_semantics = [#tpu.dimension_semantics<parallel>], iteration_bounds = array<i64: 1>, scalar_prefetch = 0 : i64, scratch_operands = 0 : i64, tpu.core_type = #tpu.core_type<tc>, window_params = [{transform_indices = @transform_0, window_bounds = array<i64: 16, 32>}, {pipeline_mode = #tpu.pipeline_mode<synchronous>, transform_indices = @transform_1, window_bounds = array<i64: 1, 32>}, {pipeline_mode = #tpu.pipeline_mode<synchronous>, transform_indices = @transform_2, window_bounds = array<i64: 1, 32>}, {transform_indices = @transform_3, window_bounds = array<i64: 16, 32>}]} {
    %c0 = arith.constant 0 : index
    %c0_0 = arith.constant 0 : index
    %0 = vector.load %arg1[%c0, %c0_0] : memref<16x32xf32, #tpu.memory_space<vmem>>, vector<16x32xf32>
    %cst = arith.constant dense<0.000000e+00> : vector<16xf32>
    %1 = vector.multi_reduction <add>, %0, %cst [1] : vector<16x32xf32> to vector<16xf32>
    %2 = vector.shape_cast %1 : vector<16xf32> to vector<16x1xf32>
    %cst_1 = arith.constant 3.200000e+01 : f32
    %3 = vector.broadcast %cst_1 : f32 to vector<16x1xf32>
    %4 = arith.divf %2, %3 : vector<16x1xf32>
    %5 = vector.broadcast %4 : vector<16x1xf32> to vector<16x32xf32>
    %6 = arith.subf %0, %5 : vector<16x32xf32>
    %7 = vector.broadcast %4 : vector<16x1xf32> to vector<16x32xf32>
    %8 = arith.subf %0, %7 : vector<16x32xf32>
    %9 = arith.mulf %6, %8 : vector<16x32xf32>
    %cst_2 = arith.constant dense<0.000000e+00> : vector<16xf32>
    %10 = vector.multi_reduction <add>, %9, %cst_2 [1] : vector<16x32xf32> to vector<16xf32>
    %11 = vector.shape_cast %10 : vector<16xf32> to vector<16x1xf32>
    %cst_3 = arith.constant 3.200000e+01 : f32
    %12 = vector.broadcast %cst_3 : f32 to vector<16x1xf32>
    %13 = arith.divf %11, %12 : vector<16x1xf32>
    %14 = vector.broadcast %4 : vector<16x1xf32> to vector<16x32xf32>
    %15 = arith.subf %0, %14 : vector<16x32xf32>
    %cst_4 = arith.constant 9.99999974E-6 : f32
    %16 = vector.broadcast %cst_4 : f32 to vector<16x1xf32>
    %17 = arith.addf %13, %16 : vector<16x1xf32>
    %18 = math.rsqrt %17 : vector<16x1xf32>
    %19 = vector.broadcast %18 : vector<16x1xf32> to vector<16x32xf32>
    %20 = arith.mulf %15, %19 : vector<16x32xf32>
    %c0_5 = arith.constant 0 : index
    %c0_6 = arith.constant 0 : index
    %21 = vector.load %arg2[%c0_5, %c0_6] : memref<1x32xf32, #tpu.memory_space<vmem>>, vector<1x32xf32>
    %22 = vector.broadcast %21 : vector<1x32xf32> to vector<16x32xf32>
    %23 = arith.mulf %20, %22 : vector<16x32xf32>
    %c0_7 = arith.constant 0 : index
    %c0_8 = arith.constant 0 : index
    %24 = vector.load %arg3[%c0_7, %c0_8] : memref<1x32xf32, #tpu.memory_space<vmem>>, vector<1x32xf32>
    %25 = vector.broadcast %24 : vector<1x32xf32> to vector<16x32xf32>
    %26 = arith.addf %23, %25 : vector<16x32xf32>
    %c0_9 = arith.constant 0 : index
    %c0_10 = arith.constant 0 : index
    %27 = vector.load %arg4[%c0_9, %c0_10] : memref<16x32xf32, #tpu.memory_space<vmem>>, vector<16x32xf32>
    tpu.vector_store %arg4[%c0_9, %c0_10], %26 {strides = array<i32>} : memref<16x32xf32, #tpu.memory_space<vmem>>, vector<16x32xf32>,
    return
  }
  func.func @transform_0(%arg0: i32) -> (i32, i32) {
    %c0_i32 = arith.constant 0 : i32
    %c0_i32_0 = arith.constant 0 : i32
    return %arg0, %c0_i32 : i32, i32
  }
  func.func @transform_1(%arg0: i32) -> (i32, i32) {
    %c0_i32 = arith.constant 0 : i32
    %c0_i32_0 = arith.constant 0 : i32
    %c0_i32_1 = arith.constant 0 : i32
    return %c0_i32, %c0_i32_0 : i32, i32
  }
  func.func @transform_2(%arg0: i32) -> (i32, i32) {
    %c0_i32 = arith.constant 0 : i32
    %c0_i32_0 = arith.constant 0 : i32
    %c0_i32_1 = arith.constant 0 : i32
    return %c0_i32, %c0_i32_0 : i32, i32
  }
  func.func @transform_3(%arg0: i32) -> (i32, i32) {
    %c0_i32 = arith.constant 0 : i32
    %c0_i32_0 = arith.constant 0 : i32
    return %arg0, %c0_i32 : i32, i32
  }
}

</mosaic_0001>

<llo_original>
// kernel: encoder_forward.9
$region0: #{encoder_forward.9}
  #allocation0 [shape = 'u32[]', space=smem, size = 0x4, offset = 0x4, fixed_abs, tag = 'smem constant byte address 0x4 - core index']
  #allocation1 [shape = 'u32[72,128]{1,0:T(1,128)}', space=vmem, size = 0x9000, scoped, tag = 'internal scratch']
  %s0 = inlined_call_operand.vmem [shape: f32[16,32], index: 0, kind: input, shape index: {}]
  %s1 = inlined_call_operand.vmem [shape: bf16[32,32], index: 1, kind: input, shape index: {}]
  %s2 = inlined_call_operand.vmem [shape: f32[1,32], index: 2, kind: input, shape index: {}]
  %s3 = inlined_call_operand.vmem [shape: bf16[32,32], index: 3, kind: input, shape index: {}]
  %s4 = inlined_call_operand.vmem [shape: f32[1,32], index: 4, kind: input, shape index: {}]
  %s5 = inlined_call_operand.vmem [shape: bf16[32,32], index: 5, kind: input, shape index: {}]
  %s6 = inlined_call_operand.vmem [shape: f32[1,32], index: 6, kind: input, shape index: {}]
  %s7 = inlined_call_operand.vmem [shape: f32[16,32], index: 7, kind: output, shape index: {0}]
  %s8 = inlined_call_operand.vmem [shape: bf16[16,32], index: 8, kind: output, shape index: {1}]
  %s9 = inlined_call_operand.vmem [shape: bf16[16,32], index: 9, kind: output, shape index: {2}]
  %10 = xla_tuple %s7, %s8, %s9
  %s11 = sld [smem:[#allocation0]]
  $region54: #{encoder_forward.9} parent=0
    _
  %s13 = ssub.s32 1, %s11
  %s14 = scalar_select 0, %s13, %s11
  // Predicated region
  $region2: #{encoder_forward.9} parent=0 // pred_check
    _
  $region3: #{encoder_forward.9} parent=0 // pred_check_branch
    %16 = sbr.rel (0) target = $region5
  $region4: #{encoder_forward.9} parent=0 // pred_region
    _
  $region5: #{encoder_forward.9} parent=0 // pred_fallthru
    _
  // Predicated region
  $region6: #{encoder_forward.9} parent=0 // pred_check
    _
  $region7: #{encoder_forward.9} parent=0 // pred_check_branch
    %18 = sbr.rel (0) target = $region9
  $region8: #{encoder_forward.9} parent=0 // pred_region
    _
  $region9: #{encoder_forward.9} parent=0 // pred_fallthru
    _
  // Predicated region
  $region10: #{encoder_forward.9} parent=0 // pred_check
    _
  $region11: #{encoder_forward.9} parent=0 // pred_check_branch
    %20 = sbr.rel (0) target = $region13
  $region12: #{encoder_forward.9} parent=0 // pred_region
    _
  $region13: #{encoder_forward.9} parent=0 // pred_fallthru
    _
  // Predicated region
  $region14: #{encoder_forward.9} parent=0 // pred_check
    _
  $region15: #{encoder_forward.9} parent=0 // pred_check_branch
    %22 = sbr.rel (0) target = $region17
  $region16: #{encoder_forward.9} parent=0 // pred_region
    _
  $region17: #{encoder_forward.9} parent=0 // pred_fallthru
    _
  // Predicated region
  $region18: #{encoder_forward.9} parent=0 // pred_check
    _
  $region19: #{encoder_forward.9} parent=0 // pred_check_branch
    %24 = sbr.rel (0) target = $region21
  $region20: #{encoder_forward.9} parent=0 // pred_region
    _
  $region21: #{encoder_forward.9} parent=0 // pred_fallthru
    _
  // Predicated region
  $region22: #{encoder_forward.9} parent=0 // pred_check
    _
  $region23: #{encoder_forward.9} parent=0 // pred_check_branch
    %26 = sbr.rel (0) target = $region25
  $region24: #{encoder_forward.9} parent=0 // pred_region
    _
  $region25: #{encoder_forward.9} parent=0 // pred_fallthru
    _
  // Predicated region
  $region26: #{encoder_forward.9} parent=0 // pred_check
    _
  $region27: #{encoder_forward.9} parent=0 // pred_check_branch
    %28 = sbr.rel (0) target = $region29
  $region28: #{encoder_forward.9} parent=0 // pred_region
    _
  $region29: #{encoder_forward.9} parent=0 // pred_fallthru
    _
  %v30 = vld [vmem:[%s0] sm:$0xff]
  %v31 = vld [vmem:[%s0 + $0x8] sm:$0xff]
  %v32 = vpack.c.bf16 %v31, %v30
  %v33 = vld [vmem:[%s1] sm:$0xf]
  %v34 = vld [vmem:[%s1 + $0x4] sm:$0xf]
  %v35 = vld [vmem:[%s1 + $0x8] sm:$0xf]
  %v36 = vld [vmem:[%s1 + $0xc] sm:$0xf]
  %v37 = vld [vmem:[%s2] sm:$0x1]
  %v39 = vperm.slane %v37, 0
  %v45 = vunpack.c.l.b16 %v33
  %v46 = vunpack.c.l.b16 %v34
  %v47 = vunpack.c.l.b16 %v35
  %v48 = vunpack.c.l.b16 %v36
  %v49 = vpack.c.b16 %v46, %v45
  %v50 = vpack.c.b16 %v48, %v47
  %vm53 = vcmask 261120
  %v55 = vsel %vm53, %v32, 0
  %57 = vmatpush.bf16.msra.mxu0 0
  %58 = vmatpush.bf16.msra.mxu0 0
  %59 = vmatpush.bf16.msra.mxu0 0
  %60 = vmatpush.bf16.msra.mxu0 0
  %61 = vmatpush.bf16.msra.mxu0 0
  %62 = vmatpush.bf16.msra.mxu0 0
  %63 = vmatpush.bf16.msra.mxu0 %v50
  %64 = vmatpush.bf16.msra.mxu0 %v49
  %65 = vmatmul.bf16.gmra.mxu0 %v55
  %v66 = vpop.f32.mrf.mxu0
  %v67 = vadd.f32 %v39, %v66
  %v68 = vpop.f32.mrf.mxu0
  %v69 = vadd.f32 %v39, %v68
  %70 = vdwg.mxu0
  %v71 = vld [vmem:[%s3] sm:$0xf]
  %v72 = vld [vmem:[%s3 + $0x4] sm:$0xf]
  %v73 = vld [vmem:[%s3 + $0x8] sm:$0xf]
  %v74 = vld [vmem:[%s3 + $0xc] sm:$0xf]
  %v75 = vld [vmem:[%s4] sm:$0x1]
  %v77 = vperm.slane %v75, 0
  %v83 = vunpack.c.l.b16 %v71
  %v84 = vunpack.c.l.b16 %v72
  %v85 = vunpack.c.l.b16 %v73
  %v86 = vunpack.c.l.b16 %v74
  %v87 = vpack.c.b16 %v84, %v83
  %v88 = vpack.c.b16 %v86, %v85
  %91 = vmatpush.bf16.msra.mxu0 0
  %92 = vmatpush.bf16.msra.mxu0 0
  %93 = vmatpush.bf16.msra.mxu0 0
  %94 = vmatpush.bf16.msra.mxu0 0
  %95 = vmatpush.bf16.msra.mxu0 0
  %96 = vmatpush.bf16.msra.mxu0 0
  %97 = vmatpush.bf16.msra.mxu0 %v88
  %98 = vmatpush.bf16.msra.mxu0 %v87
  %99 = vmatmul.bf16.gmra.mxu0 %v55
  %v100 = vpop.f32.mrf.mxu0
  %v101 = vadd.f32 %v77, %v100
  %v102 = vpop.f32.mrf.mxu0
  %v103 = vadd.f32 %v77, %v102
  %104 = vdwg.mxu0
  %v105 = vld [vmem:[%s5] sm:$0xf]
  %v106 = vld [vmem:[%s5 + $0x4] sm:$0xf]
  %v107 = vld [vmem:[%s5 + $0x8] sm:$0xf]
  %v108 = vld [vmem:[%s5 + $0xc] sm:$0xf]
  %v109 = vld [vmem:[%s6] sm:$0x1]
  %v111 = vperm.slane %v109, 0
  %v117 = vunpack.c.l.b16 %v105
  %v118 = vunpack.c.l.b16 %v106
  %v119 = vunpack.c.l.b16 %v107
  %v120 = vunpack.c.l.b16 %v108
  %v121 = vpack.c.b16 %v118, %v117
  %v122 = vpack.c.b16 %v120, %v119
  %125 = vmatpush.bf16.msra.mxu0 0
  %126 = vmatpush.bf16.msra.mxu0 0
  %127 = vmatpush.bf16.msra.mxu0 0
  %128 = vmatpush.bf16.msra.mxu0 0
  %129 = vmatpush.bf16.msra.mxu0 0
  %130 = vmatpush.bf16.msra.mxu0 0
  %131 = vmatpush.bf16.msra.mxu0 %v122
  %132 = vmatpush.bf16.msra.mxu0 %v121
  %133 = vmatmul.bf16.gmra.mxu0 %v55
  %v134 = vpop.f32.mrf.mxu0
  %v135 = vadd.f32 %v111, %v134
  %v136 = vpop.f32.mrf.mxu0
  %v137 = vadd.f32 %v111, %v136
  %138 = vdwg.mxu0
  %139 = vst.msk [vmem:[%s7] sm:$0xff] %vm53, %v67
  %140 = vst.msk [vmem:[%s7 + $0x8] sm:$0xff] %vm53, %v69
  %v141 = vpack.c.bf16 %v101, %v101
  %v142 = vpack.c.bf16 %v103, %v103
  %vm143 = vcmask 257024
  %144 = vst.msk [vmem:[%s8] sm:$0xf] %vm143, %v141
  %145 = vst.msk [vmem:[%s8 + $0x4] sm:$0xf] %vm143, %v142
  %v146 = vpack.c.bf16 %v135, %v135
  %v147 = vpack.c.bf16 %v137, %v137
  %148 = vst.msk [vmem:[%s9] sm:$0xf] %vm143, %v146
  %149 = vst.msk [vmem:[%s9 + $0x4] sm:$0xf] %vm143, %v147
  // Predicated region
  $region30: #{encoder_forward.9} parent=0 // pred_check
    _
  $region31: #{encoder_forward.9} parent=0 // pred_check_branch
    %151 = sbr.rel (0) target = $region33
  $region32: #{encoder_forward.9} parent=0 // pred_region
    _
  $region33: #{encoder_forward.9} parent=0 // pred_fallthru
    _
  // Predicated region
  $region34: #{encoder_forward.9} parent=0 // pred_check
    _
  $region35: #{encoder_forward.9} parent=0 // pred_check_branch
    %153 = sbr.rel (0) target = $region37
  $region36: #{encoder_forward.9} parent=0 // pred_region
    _
  $region37: #{encoder_forward.9} parent=0 // pred_fallthru
    _
  // Predicated region
  $region38: #{encoder_forward.9} parent=0 // pred_check
    _
  $region39: #{encoder_forward.9} parent=0 // pred_check_branch
    %155 = sbr.rel (0) target = $region41
  $region40: #{encoder_forward.9} parent=0 // pred_region
    _
  $region41: #{encoder_forward.9} parent=0 // pred_fallthru
    _
  // Predicated region
  $region42: #{encoder_forward.9} parent=0 // pred_check
    _
  $region43: #{encoder_forward.9} parent=0 // pred_check_branch
    %157 = sbr.rel (0) target = $region45
  $region44: #{encoder_forward.9} parent=0 // pred_region
    _
  $region45: #{encoder_forward.9} parent=0 // pred_fallthru
    _
  // Predicated region
  $region46: #{encoder_forward.9} parent=0 // pred_check
    _
  $region47: #{encoder_forward.9} parent=0 // pred_check_branch
    %159 = sbr.rel (0) target = $region49
  $region48: #{encoder_forward.9} parent=0 // pred_region
    _
  $region49: #{encoder_forward.9} parent=0 // pred_fallthru
    _
  // Predicated region
  $region50: #{encoder_forward.9} parent=0 // pred_check
    _
  $region51: #{encoder_forward.9} parent=0 // pred_check_branch
    %161 = sbr.rel (0) target = $region53
  $region52: #{encoder_forward.9} parent=0 // pred_region
    _
  $region53: #{encoder_forward.9} parent=0 // pred_fallthru
    _

// kernel: encoder_forward.10
$region0: #{encoder_forward.10}
  #allocation0 [shape = 'u32[]', space=smem, size = 0x4, offset = 0x4, fixed_abs, tag = 'smem constant byte address 0x4 - core index']
  #allocation1 [shape = 'u32[72,128]{1,0:T(1,128)}', space=vmem, size = 0x9000, scoped, tag = 'internal scratch']
  %s0 = inlined_call_operand.vmem [shape: bf16[2,4,8,8], index: 0, kind: input, shape index: {}]
  %s1 = inlined_call_operand.vmem [shape: bf16[2,8,32], index: 1, kind: input, shape index: {}]
  %s2 = inlined_call_operand.vmem [shape: bf16[2,8,32], index: 2, kind: input, shape index: {}]
  %s3 = inlined_call_operand.vmem [shape: f32[2,8,32], index: 3, kind: output, shape index: {}]
  %s4 = sld [smem:[#allocation0]]
  $region45: #{encoder_forward.10} parent=0
    _
  %s6 = ssub.s32 1, %s4
  %s7 = scalar_select 0, %s6, %s4
  loop: start=0, step=1, limit=4
  $region2: #{encoder_forward.10} parent=0 // loop_pre_header
    _
  $region3: #{encoder_forward.10} parent=0 // loop_header
    %s9 = sphi 0, %s13
    %p10 = scmp.ge.s32.totalorder %s9, 4
    %s19 = sphi 0, %s21
    %s22 = sphi 0, %s19
    %s23 = sphi 0, %s22
    %s39 = sphi 0, %s23
    %s45 = sphi 0, %s47
    %s48 = sphi 0, %s45
    %s49 = sphi 0, %s48
    %s65 = sphi 0, %s49
    %s71 = sphi 0, %s73
    %s74 = sphi 0, %s71
    %s75 = sphi 0, %s74
    %s91 = sphi 0, %s75
    %s97 = sphi 0, %s99
    %s100 = sphi 0, %s97
    %s101 = sphi 0, %s100
    %s117 = sphi 0, %s101
  $region4: #{encoder_forward.10} parent=0 // loop_header_branch
    %12 = sbr.rel (%p10) target = $region8
  $region5: #{encoder_forward.10} parent=0 // loop_body
    %s14 = ssub.s32 %s9, 1
    %s15 = ssub.s32 %s9, 2
    %s16 = sadd.s32 %s9, 1
    %s17 = ssub.s32 %s9, %s16
    %p18 = scmp.eq.s32.totalorder %s17, 0
    %s20 = sadd.s32 %s19, 1
    %s21 = scalar_select %p18, %s19, %s20
    %p24 = pneg %p18
    %p25 = scmp.eq.s32.totalorder %s9, 1
    %p26 = por %p24, %p25
    %p27 = scmp.ne.s32.totalorder %s19, %s22
    %p28 = scmp.eq.s32.totalorder %s9, 0
    %p29 = por %p27, %p28
    %p30 = scmp.ne.s32.totalorder %s19, %s22
    %p31 = scmp.eq.s32.totalorder %s14, 1
    %p32 = por %p30, %p31
    %p33 = scmp.ne.s32.totalorder %s22, %s23
    %p34 = scmp.eq.s32.totalorder %s14, 0
    %p35 = por %p33, %p34
    %p36 = scmp.ne.s32.totalorder %s22, %s23
    %p37 = scmp.eq.s32.totalorder %s15, 1
    %p38 = por %p36, %p37
    %p40 = scmp.ne.s32.totalorder %s23, %s39
    %p41 = scmp.eq.s32.totalorder %s15, 0
    %p42 = por %p40, %p41
    %s43 = ssub.s32 %s9, %s16
    %p44 = scmp.eq.s32.totalorder %s43, 0
    %s46 = sadd.s32 %s45, 1
    %s47 = scalar_select %p44, %s45, %s46
    %p50 = pneg %p44
    %p51 = scmp.eq.s32.totalorder %s9, 1
    %p52 = por %p50, %p51
    %p53 = scmp.ne.s32.totalorder %s45, %s48
    %p54 = scmp.eq.s32.totalorder %s9, 0
    %p55 = por %p53, %p54
    %p56 = scmp.ne.s32.totalorder %s45, %s48
    %p57 = scmp.eq.s32.totalorder %s14, 1
    %p58 = por %p56, %p57
    %p59 = scmp.ne.s32.totalorder %s48, %s49
    %p60 = scmp.eq.s32.totalorder %s14, 0
    %p61 = por %p59, %p60
    %p62 = scmp.ne.s32.totalorder %s48, %s49
    %p63 = scmp.eq.s32.totalorder %s15, 1
    %p64 = por %p62, %p63
    %p66 = scmp.ne.s32.totalorder %s49, %s65
    %p67 = scmp.eq.s32.totalorder %s15, 0
    %p68 = por %p66, %p67
    %s69 = ssub.s32 %s9, %s16
    %p70 = scmp.eq.s32.totalorder %s69, 0
    %s72 = sadd.s32 %s71, 1
    %s73 = scalar_select %p70, %s71, %s72
    %p76 = pneg %p70
    %p77 = scmp.eq.s32.totalorder %s9, 1
    %p78 = por %p76, %p77
    %p79 = scmp.ne.s32.totalorder %s71, %s74
    %p80 = scmp.eq.s32.totalorder %s9, 0
    %p81 = por %p79, %p80
    %p82 = scmp.ne.s32.totalorder %s71, %s74
    %p83 = scmp.eq.s32.totalorder %s14, 1
    %p84 = por %p82, %p83
    %p85 = scmp.ne.s32.totalorder %s74, %s75
    %p86 = scmp.eq.s32.totalorder %s14, 0
    %p87 = por %p85, %p86
    %p88 = scmp.ne.s32.totalorder %s74, %s75
    %p89 = scmp.eq.s32.totalorder %s15, 1
    %p90 = por %p88, %p89
    %p92 = scmp.ne.s32.totalorder %s75, %s91
    %p93 = scmp.eq.s32.totalorder %s15, 0
    %p94 = por %p92, %p93
    %s95 = ssub.s32 %s9, %s16
    %p96 = scmp.eq.s32.totalorder %s95, 0
    %s98 = sadd.s32 %s97, 1
    %s99 = scalar_select %p96, %s97, %s98
    %p102 = pneg %p96
    %p103 = scmp.eq.s32.totalorder %s9, 1
    %p104 = por %p102, %p103
    %p105 = scmp.ne.s32.totalorder %s97, %s100
    %p106 = scmp.eq.s32.totalorder %s9, 0
    %p107 = por %p105, %p106
    %p108 = scmp.ne.s32.totalorder %s97, %s100
    %p109 = scmp.eq.s32.totalorder %s14, 1
    %p110 = por %p108, %p109
    %p111 = scmp.ne.s32.totalorder %s100, %s101
    %p112 = scmp.eq.s32.totalorder %s14, 0
    %p113 = por %p111, %p112
    %p114 = scmp.ne.s32.totalorder %s100, %s101
    %p115 = scmp.eq.s32.totalorder %s15, 1
    %p116 = por %p114, %p115
    %p118 = scmp.ne.s32.totalorder %s101, %s117
    %p119 = scmp.eq.s32.totalorder %s15, 0
    %p120 = por %p118, %p119
    %p121 = scmp.le.s32.totalorder 1, %s9
    %p122 = scmp.lt.s32.totalorder %s9, 3
    %p123 = pnand %p121, %p122
    %p124 = pneg %p123
    // Predicated region
    $region9: #{encoder_forward.10} parent=5 // pred_check
      _
    $region10: #{encoder_forward.10} parent=5 // pred_check_branch
      %126 = sbr.rel (%p123) target = $region12
    $region11: #{encoder_forward.10} parent=5 // pred_region
      %s127 = ssub.s32 %s9, 1
    $region12: #{encoder_forward.10} parent=5 // pred_fallthru
      _
    %p128 = scmp.lt.s32.totalorder %s9, 2
    // Predicated region
    $region13: #{encoder_forward.10} parent=5 // pred_check
      %p129 = pneg %p128
    $region14: #{encoder_forward.10} parent=5 // pred_check_branch
      %131 = sbr.rel (%p129) target = $region16
    $region15: #{encoder_forward.10} parent=5 // pred_region
      // Predicated region
      $region17: #{encoder_forward.10} parent=15 // pred_check
        %p132 = pneg %p29
      $region18: #{encoder_forward.10} parent=15 // pred_check_branch
        %134 = sbr.rel (%p132) target = $region20
      $region19: #{encoder_forward.10} parent=15 // pred_region
        %p135 = scmp.lt.s32.totalorder %s9, 1
        %s136 = scalar_select %p135, %s9, 1
        %s137 = smul.addr %s136, 4
        %s138 = smul.addr %s137, 4
        %s139 = scalar_lea.vmem %s0, %s138
      $region20: #{encoder_forward.10} parent=15 // pred_fallthru
        _
      // Predicated region
      $region21: #{encoder_forward.10} parent=15 // pred_check
        %p140 = pneg %p55
      $region22: #{encoder_forward.10} parent=15 // pred_check_branch
        %142 = sbr.rel (%p140) target = $region24
      $region23: #{encoder_forward.10} parent=15 // pred_region
        %p143 = scmp.lt.s32.totalorder %s9, 1
        %s144 = scalar_select %p143, %s9, 1
        %s145 = smul.addr %s144, 4
        %s146 = scalar_lea.vmem %s1, %s145
      $region24: #{encoder_forward.10} parent=15 // pred_fallthru
        _
      // Predicated region
      $region25: #{encoder_forward.10} parent=15 // pred_check
        %p147 = pneg %p81
      $region26: #{encoder_forward.10} parent=15 // pred_check_branch
        %149 = sbr.rel (%p147) target = $region28
      $region27: #{encoder_forward.10} parent=15 // pred_region
        %p150 = scmp.lt.s32.totalorder %s9, 1
        %s151 = scalar_select %p150, %s9, 1
        %s152 = smul.addr %s151, 4
        %s153 = scalar_lea.vmem %s2, %s152
      $region28: #{encoder_forward.10} parent=15 // pred_fallthru
        _
    $region16: #{encoder_forward.10} parent=5 // pred_fallthru
      _
    %p154 = scmp.le.s32.totalorder 1, %s9
    %p155 = scmp.lt.s32.totalorder %s9, 3
    %p156 = pnand %p154, %p155
    %p157 = pneg %p156
    // Predicated region
    $region29: #{encoder_forward.10} parent=5 // pred_check
      _
    $region30: #{encoder_forward.10} parent=5 // pred_check_branch
      %159 = sbr.rel (%p156) target = $region32
    $region31: #{encoder_forward.10} parent=5 // pred_region
      %s160 = ssub.s32 %s9, 1
      %p161 = scmp.lt.s32.totalorder %s14, 1
      %s162 = scalar_select %p161, %s14, 1
      %s163 = smul.addr %s162, 4
      %s164 = smul.addr %s163, 4
      %s165 = scalar_lea.vmem %s0, %s164
      %p166 = pneg %p35
      %p167 = pneg %p32
      %p168 = scmp.lt.s32.totalorder %s14, 1
      %s169 = scalar_select %p168, %s14, 1
      %s170 = smul.addr %s169, 4
      %s171 = scalar_lea.vmem %s1, %s170
      %p172 = pneg %p61
      %p173 = pneg %p58
      %p174 = scmp.lt.s32.totalorder %s14, 1
      %s175 = scalar_select %p174, %s14, 1
      %s176 = smul.addr %s175, 4
      %s177 = scalar_lea.vmem %s2, %s176
      %p178 = pneg %p87
      %p179 = pneg %p84
      %p180 = pneg %p113
      %p181 = pneg %p110
      %p182 = scmp.lt.s32.totalorder %s14, 1
      %s183 = scalar_select %p182, %s14, 1
      %s184 = smul.addr %s183, 8
      %s185 = scalar_lea.vmem %s3, %s184
      %p186 = scmp.lt.s32.totalorder %s14, 1
      %s187 = scalar_select %p186, %s14, 1
      %s188 = smul.addr %s187, 4
      %s189 = smul.addr %s188, 4
      %s190 = scalar_lea.vmem %s0, %s189
      %p191 = scmp.lt.s32.totalorder %s14, 1
      %s192 = scalar_select %p191, %s14, 1
      %s193 = smul.addr %s192, 4
      %s194 = scalar_lea.vmem %s1, %s193
      %p195 = scmp.lt.s32.totalorder %s14, 1
      %s196 = scalar_select %p195, %s14, 1
      %s197 = smul.addr %s196, 4
      %s198 = scalar_lea.vmem %s2, %s197
      %p199 = scmp.lt.s32.totalorder %s14, 1
      %s200 = scalar_select %p199, %s14, 1
      %s201 = smul.addr %s200, 8
      %s202 = scalar_lea.vmem %s3, %s201
      %v204 = vld [vmem:[%s190] sm:$0xf]
      %v205 = vld [vmem:[%s194] sm:$0xf]
      %v206 = vld [vmem:[%s198] sm:$0xf]
      %vm207 = vcmask 64512
      %v209 = vsel %vm207, %v204, 0
      %v212 = vsel %vm207, %v205, 0
      %214 = vmatpush.bf16.xpose.msra.mxu0 0
      %215 = vmatpush.bf16.xpose.msra.mxu0 0
      %216 = vmatpush.bf16.xpose.msra.mxu0 0
      %217 = vmatpush.bf16.xpose.msra.mxu0 0
      %218 = vmatpush.bf16.xpose.msra.mxu0 0
      %219 = vmatpush.bf16.xpose.msra.mxu0 0
      %220 = vmatpush.bf16.xpose.msra.mxu0 0
      %221 = vmatpush.bf16.xpose.msra.mxu0 %v212
      %222 = vmatmul.bf16.gmra.mxu0 %v209
      %v223 = vpop.f32.mrf.mxu0
      %v224 = vadd.f32 0.0, %v223
      %v225 = vpop.f32.mrf.mxu0
      %226 = vdwg.mxu0
      %v227 = vmul.f32 %v224, 0.35355338
      %v228 = vsel %vm207, %v227, -inf
      %229 = vmax.xlane.f32.xlu0 %v228
      %v230 = vpop.xlane.xlu0 %229
      %v231 = vsub.f32 %v227, %v230
      %v232 = vmul.f32 %v231, 1.442695
      %v233 = vpow.pop %v232
      %v234 = vsel %vm207, %v233, 0.0
      %235 = vadd.xlane.f32.xlu0 %v234
      %v236 = vpop.xlane.xlu0 %235
      %v237 = vrcp.pop %v236
      %v238 = vmul.f32 %v233, %v237
      %v239 = vpack.c.bf16 %v238, %v238
      %v241 = vsel %vm207, %v239, 0
      %vm243 = vcmask 1043456
      %v245 = vsel %vm243, %v206, 0
      %247 = vmatpush.bf16.msra.mxu0 0
      %248 = vmatpush.bf16.msra.mxu0 0
      %249 = vmatpush.bf16.msra.mxu0 0
      %250 = vmatpush.bf16.msra.mxu0 0
      %251 = vmatpush.bf16.msra.mxu0 0
      %252 = vmatpush.bf16.msra.mxu0 0
      %253 = vmatpush.bf16.msra.mxu0 0
      %254 = vmatpush.bf16.msra.mxu0 %v245
      %255 = vmatmul.bf16.gmra.mxu0 %v241
      %v256 = vpop.f32.mrf.mxu0
      %v257 = vadd.f32 0.0, %v256
      %v258 = vpop.f32.mrf.mxu0
      %259 = vdwg.mxu0
      %260 = vst.msk [vmem:[%s202] sm:$0xff] %vm207, %v257
      %s261 = scalar_lea.vmem %s190, 4
      %v262 = vld [vmem:[%s261] sm:$0xf]
      %v263 = vld [vmem:[%s194] sm:$0xf]
      %v264 = vld [vmem:[%s198] sm:$0xf]
      %v266 = vunpack.c.l.b16 %v263
      %v267 = vpack.c.b16 %v266, %v266
      %268 = vrot.lane.b32.xlu0 %v267, 120
      %v269 = vpop.permute.xlu0 %268
      %v271 = vsel %vm207, %v262, 0
      %v274 = vsel %vm207, %v269, 0
      %276 = vmatpush.bf16.xpose.msra.mxu0 0
      %277 = vmatpush.bf16.xpose.msra.mxu0 0
      %278 = vmatpush.bf16.xpose.msra.mxu0 0
      %279 = vmatpush.bf16.xpose.msra.mxu0 0
      %280 = vmatpush.bf16.xpose.msra.mxu0 0
      %281 = vmatpush.bf16.xpose.msra.mxu0 0
      %282 = vmatpush.bf16.xpose.msra.mxu0 0
      %283 = vmatpush.bf16.xpose.msra.mxu0 %v274
      %284 = vmatmul.bf16.gmra.mxu0 %v271
      %v285 = vpop.f32.mrf.mxu0
      %v286 = vadd.f32 0.0, %v285
      %v287 = vpop.f32.mrf.mxu0
      %288 = vdwg.mxu0
      %v289 = vmul.f32 %v286, 0.35355338
      %v290 = vsel %vm207, %v289, -inf
      %291 = vmax.xlane.f32.xlu0 %v290
      %v292 = vpop.xlane.xlu0 %291
      %v293 = vsub.f32 %v289, %v292
      %v294 = vmul.f32 %v293, 1.442695
      %v295 = vpow.pop %v294
      %v296 = vsel %vm207, %v295, 0.0
      %297 = vadd.xlane.f32.xlu0 %v296
      %v298 = vpop.xlane.xlu0 %297
      %v299 = vrcp.pop %v298
      %v300 = vmul.f32 %v295, %v299
      %v301 = vpack.c.bf16 %v300, %v300
      %v303 = vunpack.c.l.b16 %v264
      %v304 = vpack.c.b16 %v303, %v303
      %305 = vrot.lane.b32.xlu0 %v304, 120
      %v306 = vpop.permute.xlu0 %305
      %v308 = vsel %vm207, %v301, 0
      %v311 = vsel %vm243, %v306, 0
      %313 = vmatpush.bf16.msra.mxu0 0
      %314 = vmatpush.bf16.msra.mxu0 0
      %315 = vmatpush.bf16.msra.mxu0 0
      %316 = vmatpush.bf16.msra.mxu0 0
      %317 = vmatpush.bf16.msra.mxu0 0
      %318 = vmatpush.bf16.msra.mxu0 0
      %319 = vmatpush.bf16.msra.mxu0 0
      %320 = vmatpush.bf16.msra.mxu0 %v311
      %321 = vmatmul.bf16.gmra.mxu0 %v308
      %v322 = vpop.f32.mrf.mxu0
      %v323 = vadd.f32 0.0, %v322
      %v324 = vpop.f32.mrf.mxu0
      %325 = vdwg.mxu0
      %327 = vrot.lane.b32.xlu0 %v323, 8
      %v328 = vpop.permute.xlu0 %327
      %vm330 = vcmask 130112
      %331 = vst.msk [vmem:[%s202] sm:$0xff] %vm330, %v328
      %s332 = scalar_lea.vmem %s190, 8
      %v333 = vld [vmem:[%s332] sm:$0xf]
      %v334 = vld [vmem:[%s194] sm:$0xf]
      %v335 = vld [vmem:[%s198] sm:$0xf]
      %v337 = vunpack.c.l.b16 %v334
      %v338 = vpack.c.b16 %v337, %v337
      %339 = vrot.lane.b32.xlu0 %v338, 112
      %v340 = vpop.permute.xlu0 %339
      %v342 = vsel %vm207, %v333, 0
      %v345 = vsel %vm207, %v340, 0
      %347 = vmatpush.bf16.xpose.msra.mxu0 0
      %348 = vmatpush.bf16.xpose.msra.mxu0 0
      %349 = vmatpush.bf16.xpose.msra.mxu0 0
      %350 = vmatpush.bf16.xpose.msra.mxu0 0
      %351 = vmatpush.bf16.xpose.msra.mxu0 0
      %352 = vmatpush.bf16.xpose.msra.mxu0 0
      %353 = vmatpush.bf16.xpose.msra.mxu0 0
      %354 = vmatpush.bf16.xpose.msra.mxu0 %v345
      %355 = vmatmul.bf16.gmra.mxu0 %v342
      %v356 = vpop.f32.mrf.mxu0
      %v357 = vadd.f32 0.0, %v356
      %v358 = vpop.f32.mrf.mxu0
      %359 = vdwg.mxu0
      %v360 = vmul.f32 %v357, 0.35355338
      %v361 = vsel %vm207, %v360, -inf
      %362 = vmax.xlane.f32.xlu0 %v361
      %v363 = vpop.xlane.xlu0 %362
      %v364 = vsub.f32 %v360, %v363
      %v365 = vmul.f32 %v364, 1.442695
      %v366 = vpow.pop %v365
      %v367 = vsel %vm207, %v366, 0.0
      %368 = vadd.xlane.f32.xlu0 %v367
      %v369 = vpop.xlane.xlu0 %368
      %v370 = vrcp.pop %v369
      %v371 = vmul.f32 %v366, %v370
      %v372 = vpack.c.bf16 %v371, %v371
      %v374 = vunpack.c.l.b16 %v335
      %v375 = vpack.c.b16 %v374, %v374
      %376 = vrot.lane.b32.xlu0 %v375, 112
      %v377 = vpop.permute.xlu0 %376
      %v379 = vsel %vm207, %v372, 0
      %v382 = vsel %vm243, %v377, 0
      %384 = vmatpush.bf16.msra.mxu0 0
      %385 = vmatpush.bf16.msra.mxu0 0
      %386 = vmatpush.bf16.msra.mxu0 0
      %387 = vmatpush.bf16.msra.mxu0 0
      %388 = vmatpush.bf16.msra.mxu0 0
      %389 = vmatpush.bf16.msra.mxu0 0
      %390 = vmatpush.bf16.msra.mxu0 0
      %391 = vmatpush.bf16.msra.mxu0 %v382
      %392 = vmatmul.bf16.gmra.mxu0 %v379
      %v393 = vpop.f32.mrf.mxu0
      %v394 = vadd.f32 0.0, %v393
      %v395 = vpop.f32.mrf.mxu0
      %396 = vdwg.mxu0
      %398 = vrot.lane.b32.xlu0 %v394, 16
      %v399 = vpop.permute.xlu0 %398
      %vm401 = vcmask 195712
      %402 = vst.msk [vmem:[%s202] sm:$0xff] %vm401, %v399
      %s403 = scalar_lea.vmem %s190, 12
      %v404 = vld [vmem:[%s403] sm:$0xf]
      %v405 = vld [vmem:[%s194] sm:$0xf]
      %v406 = vld [vmem:[%s198] sm:$0xf]
      %v408 = vunpack.c.l.b16 %v405
      %v409 = vpack.c.b16 %v408, %v408
      %410 = vrot.lane.b32.xlu0 %v409, 104
      %v411 = vpop.permute.xlu0 %410
      %v413 = vsel %vm207, %v404, 0
      %v416 = vsel %vm207, %v411, 0
      %418 = vmatpush.bf16.xpose.msra.mxu0 0
      %419 = vmatpush.bf16.xpose.msra.mxu0 0
      %420 = vmatpush.bf16.xpose.msra.mxu0 0
      %421 = vmatpush.bf16.xpose.msra.mxu0 0
      %422 = vmatpush.bf16.xpose.msra.mxu0 0
      %423 = vmatpush.bf16.xpose.msra.mxu0 0
      %424 = vmatpush.bf16.xpose.msra.mxu0 0
      %425 = vmatpush.bf16.xpose.msra.mxu0 %v416
      %426 = vmatmul.bf16.gmra.mxu0 %v413
      %v427 = vpop.f32.mrf.mxu0
      %v428 = vadd.f32 0.0, %v427
      %v429 = vpop.f32.mrf.mxu0
      %430 = vdwg.mxu0
      %v431 = vmul.f32 %v428, 0.35355338
      %v432 = vsel %vm207, %v431, -inf
      %433 = vmax.xlane.f32.xlu0 %v432
      %v434 = vpop.xlane.xlu0 %433
      %v435 = vsub.f32 %v431, %v434
      %v436 = vmul.f32 %v435, 1.442695
      %v437 = vpow.pop %v436
      %v438 = vsel %vm207, %v437, 0.0
      %439 = vadd.xlane.f32.xlu0 %v438
      %v440 = vpop.xlane.xlu0 %439
      %v441 = vrcp.pop %v440
      %v442 = vmul.f32 %v437, %v441
      %v443 = vpack.c.bf16 %v442, %v442
      %v445 = vunpack.c.l.b16 %v406
      %v446 = vpack.c.b16 %v445, %v445
      %447 = vrot.lane.b32.xlu0 %v446, 104
      %v448 = vpop.permute.xlu0 %447
      %v450 = vsel %vm207, %v443, 0
      %v453 = vsel %vm243, %v448, 0
      %455 = vmatpush.bf16.msra.mxu0 0
      %456 = vmatpush.bf16.msra.mxu0 0
      %457 = vmatpush.bf16.msra.mxu0 0
      %458 = vmatpush.bf16.msra.mxu0 0
      %459 = vmatpush.bf16.msra.mxu0 0
      %460 = vmatpush.bf16.msra.mxu0 0
      %461 = vmatpush.bf16.msra.mxu0 0
      %462 = vmatpush.bf16.msra.mxu0 %v453
      %463 = vmatmul.bf16.gmra.mxu0 %v450
      %v464 = vpop.f32.mrf.mxu0
      %v465 = vadd.f32 0.0, %v464
      %v466 = vpop.f32.mrf.mxu0
      %467 = vdwg.mxu0
      %469 = vrot.lane.b32.xlu0 %v465, 24
      %v470 = vpop.permute.xlu0 %469
      %vm472 = vcmask 261312
      %473 = vst.msk [vmem:[%s202] sm:$0xff] %vm472, %v470
      %p474 = scmp.lt.s32.totalorder %s14, 1
      %s475 = scalar_select %p474, %s14, 1
      %s476 = smul.addr %s475, 8
      %s477 = scalar_lea.vmem %s3, %s476
      // Predicated region
      $region33: #{encoder_forward.10} parent=31 // pred_check
        %p478 = pneg %p110
      $region34: #{encoder_forward.10} parent=31 // pred_check_branch
        %480 = sbr.rel (%p478) target = $region36
      $region35: #{encoder_forward.10} parent=31 // pred_region
        _
      $region36: #{encoder_forward.10} parent=31 // pred_fallthru
        _
    $region32: #{encoder_forward.10} parent=5 // pred_fallthru
      _
    %p481 = scmp.le.s32.totalorder 2, %s9
    // Predicated region
    $region37: #{encoder_forward.10} parent=5 // pred_check
      %p482 = pneg %p481
    $region38: #{encoder_forward.10} parent=5 // pred_check_branch
      %484 = sbr.rel (%p482) target = $region40
    $region39: #{encoder_forward.10} parent=5 // pred_region
      %s485 = ssub.s32 %s9, 2
      // Predicated region
      $region41: #{encoder_forward.10} parent=39 // pred_check
        %p486 = pneg %p116
      $region42: #{encoder_forward.10} parent=39 // pred_check_branch
        %488 = sbr.rel (%p486) target = $region44
      $region43: #{encoder_forward.10} parent=39 // pred_region
        %p489 = scmp.lt.s32.totalorder %s15, 1
        %s490 = scalar_select %p489, %s15, 1
        %s491 = smul.addr %s490, 8
        %s492 = scalar_lea.vmem %s3, %s491
      $region44: #{encoder_forward.10} parent=39 // pred_fallthru
        _
    $region40: #{encoder_forward.10} parent=5 // pred_fallthru
      _
  $region6: #{encoder_forward.10} parent=0 // loop_footer
    %s13 = sadd.s32 1, %s9
  $region7: #{encoder_forward.10} parent=0 // loop_footer_branch
    %8 = sbr.rel target = $region3
  $region8: #{encoder_forward.10} parent=0 // loop_exit
    _

// kernel: encoder_forward.11
$region0: #{encoder_forward.11}
  #allocation0 [shape = 'u32[]', space=smem, size = 0x4, offset = 0x4, fixed_abs, tag = 'smem constant byte address 0x4 - core index']
  #allocation1 [shape = 'u32[72,128]{1,0:T(1,128)}', space=vmem, size = 0x9000, scoped, tag = 'internal scratch']
  %s0 = inlined_call_operand.vmem [shape: f32[16,32], index: 0, kind: input, shape index: {}]
  %s1 = inlined_call_operand.vmem [shape: f32[16,32], index: 1, kind: input, shape index: {}]
  %s2 = inlined_call_operand.vmem [shape: bf16[32,32], index: 2, kind: input, shape index: {}]
  %s3 = inlined_call_operand.vmem [shape: f32[1,32], index: 3, kind: input, shape index: {}]
  %s4 = inlined_call_operand.vmem [shape: f32[1,32], index: 4, kind: input, shape index: {}]
  %s5 = inlined_call_operand.vmem [shape: f32[1,32], index: 5, kind: input, shape index: {}]
  %s6 = inlined_call_operand.vmem [shape: f32[16,32], index: 6, kind: output, shape index: {}]
  %s7 = sld [smem:[#allocation0]]
  $region34: #{encoder_forward.11} parent=0
    _
  %s9 = ssub.s32 1, %s7
  %s10 = scalar_select 0, %s9, %s7
  // Predicated region
  $region2: #{encoder_forward.11} parent=0 // pred_check
    _
  $region3: #{encoder_forward.11} parent=0 // pred_check_branch
    %12 = sbr.rel (0) target = $region5
  $region4: #{encoder_forward.11} parent=0 // pred_region
    _
  $region5: #{encoder_forward.11} parent=0 // pred_fallthru
    _
  // Predicated region
  $region6: #{encoder_forward.11} parent=0 // pred_check
    _
  $region7: #{encoder_forward.11} parent=0 // pred_check_branch
    %14 = sbr.rel (0) target = $region9
  $region8: #{encoder_forward.11} parent=0 // pred_region
    _
  $region9: #{encoder_forward.11} parent=0 // pred_fallthru
    _
  // Predicated region
  $region10: #{encoder_forward.11} parent=0 // pred_check
    _
  $region11: #{encoder_forward.11} parent=0 // pred_check_branch
    %16 = sbr.rel (0) target = $region13
  $region12: #{encoder_forward.11} parent=0 // pred_region
    _
  $region13: #{encoder_forward.11} parent=0 // pred_fallthru
    _
  // Predicated region
  $region14: #{encoder_forward.11} parent=0 // pred_check
    _
  $region15: #{encoder_forward.11} parent=0 // pred_check_branch
    %18 = sbr.rel (0) target = $region17
  $region16: #{encoder_forward.11} parent=0 // pred_region
    _
  $region17: #{encoder_forward.11} parent=0 // pred_fallthru
    _
  // Predicated region
  $region18: #{encoder_forward.11} parent=0 // pred_check
    _
  $region19: #{encoder_forward.11} parent=0 // pred_check_branch
    %20 = sbr.rel (0) target = $region21
  $region20: #{encoder_forward.11} parent=0 // pred_region
    _
  $region21: #{encoder_forward.11} parent=0 // pred_fallthru
    _
  // Predicated region
  $region22: #{encoder_forward.11} parent=0 // pred_check
    _
  $region23: #{encoder_forward.11} parent=0 // pred_check_branch
    %22 = sbr.rel (0) target = $region25
  $region24: #{encoder_forward.11} parent=0 // pred_region
    _
  $region25: #{encoder_forward.11} parent=0 // pred_fallthru
    _
  %v24 = vld [vmem:[%s0] sm:$0xff]
  %v25 = vld [vmem:[%s0 + $0x8] sm:$0xff]
  %v26 = vpack.c.bf16 %v25, %v24
  %v27 = vld [vmem:[%s2] sm:$0xf]
  %v28 = vld [vmem:[%s2 + $0x4] sm:$0xf]
  %v29 = vld [vmem:[%s2 + $0x8] sm:$0xf]
  %v30 = vld [vmem:[%s2 + $0xc] sm:$0xf]
  %v31 = vld [vmem:[%s3] sm:$0x1]
  %v33 = vperm.slane %v31, 0
  %v39 = vunpack.c.l.b16 %v27
  %v40 = vunpack.c.l.b16 %v28
  %v41 = vunpack.c.l.b16 %v29
  %v42 = vunpack.c.l.b16 %v30
  %v43 = vpack.c.b16 %v40, %v39
  %v44 = vpack.c.b16 %v42, %v41
  %vm47 = vcmask 261120
  %v49 = vsel %vm47, %v26, 0
  %51 = vmatpush.bf16.msra.mxu0 0
  %52 = vmatpush.bf16.msra.mxu0 0
  %53 = vmatpush.bf16.msra.mxu0 0
  %54 = vmatpush.bf16.msra.mxu0 0
  %55 = vmatpush.bf16.msra.mxu0 0
  %56 = vmatpush.bf16.msra.mxu0 0
  %57 = vmatpush.bf16.msra.mxu0 %v44
  %58 = vmatpush.bf16.msra.mxu0 %v43
  %59 = vmatmul.bf16.gmra.mxu0 %v49
  %v60 = vpop.f32.mrf.mxu0
  %v61 = vadd.f32 %v33, %v60
  %v62 = vpop.f32.mrf.mxu0
  %v63 = vadd.f32 %v33, %v62
  %64 = vdwg.mxu0
  %v65 = vld [vmem:[%s1] sm:$0xff]
  %v66 = vld [vmem:[%s1 + $0x8] sm:$0xff]
  %v67 = vadd.f32 %v65, %v61
  %v68 = vadd.f32 %v66, %v63
  %v69 = vsel %vm47, %v67, 0.0
  %70 = vadd.xlane.f32.xlu0 %v69
  %v71 = vpop.xlane.xlu0 %70
  %v72 = vsel %vm47, %v68, 0.0
  %73 = vadd.xlane.f32.xlu0 %v72
  %v74 = vpop.xlane.xlu0 %73
  %v75 = vrcp.pop 32.0
  %v76 = vmul.f32 32.0, %v75
  %v77 = vsub.f32 1.0, %v76
  %v78 = vmul.f32 %v75, %v77
  %v79 = vadd.f32 %v75, %v78
  %vm80 = vweird.f32 %v75
  %v81 = vsel %vm80, %v75, %v79
  %v82 = vmul.f32 %v71, %v81
  %v83 = vmul.f32 %v74, %v81
  %v84 = vsub.f32 %v67, %v82
  %v85 = vsub.f32 %v68, %v83
  %v86 = vmul.f32 %v84, %v84
  %v87 = vmul.f32 %v85, %v85
  %v88 = vsel %vm47, %v86, 0.0
  %89 = vadd.xlane.f32.xlu0 %v88
  %v90 = vpop.xlane.xlu0 %89
  %v91 = vsel %vm47, %v87, 0.0
  %92 = vadd.xlane.f32.xlu0 %v91
  %v93 = vpop.xlane.xlu0 %92
  %v94 = vmul.f32 %v90, %v81
  %v95 = vmul.f32 %v93, %v81
  %v96 = vadd.f32 %v94, 1e-05
  %v97 = vadd.f32 %v95, 1e-05
  %v98 = vrsqrt.pop %v96
  %v99 = vmul.f32 %v98, %v96
  %v100 = vmul.f32 %v99, %v98
  %v101 = vmul.f32 0.5, %v100
  %v102 = vsub.f32 1.5, %v101
  %v103 = vmul.f32 %v98, %v102
  %vm104 = vweird.f32 %v96
  %vm105 = vweird.f32 %v98
  %vm106 = vmor %vm104, %vm105
  %v107 = vsel %vm106, %v98, %v103
  %v108 = vrsqrt.pop %v97
  %v109 = vmul.f32 %v108, %v97
  %v110 = vmul.f32 %v109, %v108
  %v111 = vmul.f32 0.5, %v110
  %v112 = vsub.f32 1.5, %v111
  %v113 = vmul.f32 %v108, %v112
  %vm114 = vweird.f32 %v97
  %vm115 = vweird.f32 %v108
  %vm116 = vmor %vm114, %vm115
  %v117 = vsel %vm116, %v108, %v113
  %v118 = vmul.f32 %v84, %v107
  %v119 = vmul.f32 %v85, %v117
  %v120 = vld [vmem:[%s4] sm:$0x1]
  %v122 = vperm.slane %v120, 0
  %v124 = vmul.f32 %v118, %v122
  %v125 = vmul.f32 %v119, %v122
  %v126 = vld [vmem:[%s5] sm:$0x1]
  %v128 = vperm.slane %v126, 0
  %v130 = vadd.f32 %v124, %v128
  %v131 = vadd.f32 %v125, %v128
  %132 = vst.msk [vmem:[%s6] sm:$0xff] %vm47, %v130
  %133 = vst.msk [vmem:[%s6 + $0x8] sm:$0xff] %vm47, %v131
  // Predicated region
  $region26: #{encoder_forward.11} parent=0 // pred_check
    _
  $region27: #{encoder_forward.11} parent=0 // pred_check_branch
    %135 = sbr.rel (0) target = $region29
  $region28: #{encoder_forward.11} parent=0 // pred_region
    _
  $region29: #{encoder_forward.11} parent=0 // pred_fallthru
    _
  // Predicated region
  $region30: #{encoder_forward.11} parent=0 // pred_check
    _
  $region31: #{encoder_forward.11} parent=0 // pred_check_branch
    %137 = sbr.rel (0) target = $region33
  $region32: #{encoder_forward.11} parent=0 // pred_region
    _
  $region33: #{encoder_forward.11} parent=0 // pred_fallthru
    _

// kernel: encoder_forward.19
$region0: #{encoder_forward.19}
  #allocation0 [shape = 'u32[]', space=smem, size = 0x4, offset = 0x4, fixed_abs, tag = 'smem constant byte address 0x4 - core index']
  #allocation1 [shape = 'u32[72,128]{1,0:T(1,128)}', space=vmem, size = 0x9000, scoped, tag = 'internal scratch']
  %s0 = inlined_call_operand.vmem [shape: f32[16,32], index: 0, kind: input, shape index: {}]
  %s1 = inlined_call_operand.vmem [shape: f32[1,32], index: 1, kind: input, shape index: {}]
  %s2 = inlined_call_operand.vmem [shape: f32[1,32], index: 2, kind: input, shape index: {}]
  %s3 = inlined_call_operand.hbm [shape: f32[16,32], index: 3, kind: output, shape index: {}]
  %s4 = sld [smem:[#allocation0]]
  $region22: #{encoder_forward.19} parent=0
    _
  %s6 = ssub.s32 1, %s4
  %s7 = scalar_select 0, %s6, %s4
  $region1: #{encoder_forward.19} parent=0
    #allocation2 [shape = 'u8[8192]{0}', space=vmem, size = 0x2000, scoped, tag = 'output window, operand 0, single buffered']
    #allocation3 [shape = 's32[1]{0}', space=sflag, size = 0x4, scoped, tag = 'scoped memory for encoder_forward.19']
    %8 = vsyncpa [#allocation3], 0
    // Predicated region
    $region2: #{encoder_forward.19} parent=1 // pred_check
      _
    $region3: #{encoder_forward.19} parent=1 // pred_check_branch
      %10 = sbr.rel (0) target = $region5
    $region4: #{encoder_forward.19} parent=1 // pred_region
      _
    $region5: #{encoder_forward.19} parent=1 // pred_fallthru
      _
    // Predicated region
    $region6: #{encoder_forward.19} parent=1 // pred_check
      _
    $region7: #{encoder_forward.19} parent=1 // pred_check_branch
      %12 = sbr.rel (0) target = $region9
    $region8: #{encoder_forward.19} parent=1 // pred_region
      _
    $region9: #{encoder_forward.19} parent=1 // pred_fallthru
      _
    // Predicated region
    $region10: #{encoder_forward.19} parent=1 // pred_check
      _
    $region11: #{encoder_forward.19} parent=1 // pred_check_branch
      %14 = sbr.rel (0) target = $region13
    $region12: #{encoder_forward.19} parent=1 // pred_region
      _
    $region13: #{encoder_forward.19} parent=1 // pred_fallthru
      _
    %v15 = vld [vmem:[%s0] sm:$0xff]
    %v16 = vld [vmem:[%s0 + $0x8] sm:$0xff]
    %vm17 = vcmask 261120
    %v18 = vsel %vm17, %v15, 0.0
    %19 = vadd.xlane.f32.xlu0 %v18
    %v20 = vpop.xlane.xlu0 %19
    %v21 = vsel %vm17, %v16, 0.0
    %22 = vadd.xlane.f32.xlu0 %v21
    %v23 = vpop.xlane.xlu0 %22
    %v24 = vrcp.pop 32.0
    %v25 = vmul.f32 32.0, %v24
    %v26 = vsub.f32 1.0, %v25
    %v27 = vmul.f32 %v24, %v26
    %v28 = vadd.f32 %v24, %v27
    %vm29 = vweird.f32 %v24
    %v30 = vsel %vm29, %v24, %v28
    %v31 = vmul.f32 %v20, %v30
    %v32 = vmul.f32 %v23, %v30
    %v33 = vsub.f32 %v15, %v31
    %v34 = vsub.f32 %v16, %v32
    %v35 = vmul.f32 %v33, %v33
    %v36 = vmul.f32 %v34, %v34
    %v37 = vsel %vm17, %v35, 0.0
    %38 = vadd.xlane.f32.xlu0 %v37
    %v39 = vpop.xlane.xlu0 %38
    %v40 = vsel %vm17, %v36, 0.0
    %41 = vadd.xlane.f32.xlu0 %v40
    %v42 = vpop.xlane.xlu0 %41
    %v43 = vmul.f32 %v39, %v30
    %v44 = vmul.f32 %v42, %v30
    %v45 = vadd.f32 %v43, 1e-05
    %v46 = vadd.f32 %v44, 1e-05
    %v47 = vrsqrt.pop %v45
    %v48 = vmul.f32 %v47, %v45
    %v49 = vmul.f32 %v48, %v47
    %v50 = vmul.f32 0.5, %v49
    %v51 = vsub.f32 1.5, %v50
    %v52 = vmul.f32 %v47, %v51
    %vm53 = vweird.f32 %v45
    %vm54 = vweird.f32 %v47
    %vm55 = vmor %vm53, %vm54
    %v56 = vsel %vm55, %v47, %v52
    %v57 = vrsqrt.pop %v46
    %v58 = vmul.f32 %v57, %v46
    %v59 = vmul.f32 %v58, %v57
    %v60 = vmul.f32 0.5, %v59
    %v61 = vsub.f32 1.5, %v60
    %v62 = vmul.f32 %v57, %v61
    %vm63 = vweird.f32 %v46
    %vm64 = vweird.f32 %v57
    %vm65 = vmor %vm63, %vm64
    %v66 = vsel %vm65, %v57, %v62
    %v67 = vmul.f32 %v33, %v56
    %v68 = vmul.f32 %v34, %v66
    %v69 = vld [vmem:[%s1] sm:$0x1]
    %v71 = vperm.slane %v69, 0
    %v73 = vmul.f32 %v67, %v71
    %v74 = vmul.f32 %v68, %v71
    %v75 = vld [vmem:[%s2] sm:$0x1]
    %v77 = vperm.slane %v75, 0
    %v79 = vadd.f32 %v73, %v77
    %v80 = vadd.f32 %v74, %v77
    %81 = vst.msk [vmem:[#allocation2] sm:$0xff] %vm17, %v79
    %82 = vst.msk [vmem:[#allocation2 + $0x8] sm:$0xff] %vm17, %v80
    // Predicated region
    $region14: #{encoder_forward.19} parent=1 // pred_check
      _
    $region15: #{encoder_forward.19} parent=1 // pred_check_branch
      %84 = sbr.rel (0) target = $region17
    $region16: #{encoder_forward.19} parent=1 // pred_region
      %86 = vsyncadd [#allocation3], 0
      %s87 = sshll.u32 [#allocation2], 4
      %s88 = int_to_ptr.vmem [resolvable:$true] %s87
      %s89 = sshll.u32 %s3, 4
      %s90 = int_to_ptr.hbm [resolvable:$true] %s89
      %95 = dma.vmem_to_hbm [thread:$0]  %s88, 256, %s90, [#allocation3], 128, 128, 8
    $region17: #{encoder_forward.19} parent=1 // pred_fallthru
      _
    // Predicated region
    $region18: #{encoder_forward.19} parent=1 // pred_check
      _
    $region19: #{encoder_forward.19} parent=1 // pred_check_branch
      %97 = sbr.rel (0) target = $region21
    $region20: #{encoder_forward.19} parent=1 // pred_region
      %99 = dma.done [#allocation3], 256
    $region21: #{encoder_forward.19} parent=1 // pred_fallthru
      _
    %100 = vsyncpa [#allocation3], 1

// kernel: encoder_forward.14
$region0: #{encoder_forward.14}
  #allocation0 [shape = 'u32[]', space=smem, size = 0x4, offset = 0x4, fixed_abs, tag = 'smem constant byte address 0x4 - core index']
  #allocation1 [shape = 'u32[72,128]{1,0:T(1,128)}', space=vmem, size = 0x9000, scoped, tag = 'internal scratch']
  %s0 = inlined_call_operand.vmem [shape: f32[16,32], index: 0, kind: input, shape index: {}]
  %s1 = inlined_call_operand.vmem [shape: bf16[32,64], index: 1, kind: input, shape index: {}]
  %s2 = inlined_call_operand.vmem [shape: f32[1,64], index: 2, kind: input, shape index: {}]
  %s3 = inlined_call_operand.vmem [shape: bf16[64,32], index: 3, kind: input, shape index: {}]
  %s4 = inlined_call_operand.vmem [shape: f32[1,32], index: 4, kind: input, shape index: {}]
  %s5 = inlined_call_operand.vmem [shape: f32[1,32], index: 5, kind: input, shape index: {}]
  %s6 = inlined_call_operand.vmem [shape: f32[1,32], index: 6, kind: input, shape index: {}]
  %s7 = inlined_call_operand.vmem [shape: f32[16,32], index: 7, kind: output, shape index: {}]
  %s8 = sld [smem:[#allocation0]]
  $region38: #{encoder_forward.14} parent=0
    _
  %s10 = ssub.s32 1, %s8
  %s11 = scalar_select 0, %s10, %s8
  // Predicated region
  $region2: #{encoder_forward.14} parent=0 // pred_check
    _
  $region3: #{encoder_forward.14} parent=0 // pred_check_branch
    %13 = sbr.rel (0) target = $region5
  $region4: #{encoder_forward.14} parent=0 // pred_region
    _
  $region5: #{encoder_forward.14} parent=0 // pred_fallthru
    _
  // Predicated region
  $region6: #{encoder_forward.14} parent=0 // pred_check
    _
  $region7: #{encoder_forward.14} parent=0 // pred_check_branch
    %15 = sbr.rel (0) target = $region9
  $region8: #{encoder_forward.14} parent=0 // pred_region
    _
  $region9: #{encoder_forward.14} parent=0 // pred_fallthru
    _
  // Predicated region
  $region10: #{encoder_forward.14} parent=0 // pred_check
    _
  $region11: #{encoder_forward.14} parent=0 // pred_check_branch
    %17 = sbr.rel (0) target = $region13
  $region12: #{encoder_forward.14} parent=0 // pred_region
    _
  $region13: #{encoder_forward.14} parent=0 // pred_fallthru
    _
  // Predicated region
  $region14: #{encoder_forward.14} parent=0 // pred_check
    _
  $region15: #{encoder_forward.14} parent=0 // pred_check_branch
    %19 = sbr.rel (0) target = $region17
  $region16: #{encoder_forward.14} parent=0 // pred_region
    _
  $region17: #{encoder_forward.14} parent=0 // pred_fallthru
    _
  // Predicated region
  $region18: #{encoder_forward.14} parent=0 // pred_check
    _
  $region19: #{encoder_forward.14} parent=0 // pred_check_branch
    %21 = sbr.rel (0) target = $region21
  $region20: #{encoder_forward.14} parent=0 // pred_region
    _
  $region21: #{encoder_forward.14} parent=0 // pred_fallthru
    _
  // Predicated region
  $region22: #{encoder_forward.14} parent=0 // pred_check
    _
  $region23: #{encoder_forward.14} parent=0 // pred_check_branch
    %23 = sbr.rel (0) target = $region25
  $region24: #{encoder_forward.14} parent=0 // pred_region
    _
  $region25: #{encoder_forward.14} parent=0 // pred_fallthru
    _
  // Predicated region
  $region26: #{encoder_forward.14} parent=0 // pred_check
    _
  $region27: #{encoder_forward.14} parent=0 // pred_check_branch
    %25 = sbr.rel (0) target = $region29
  $region28: #{encoder_forward.14} parent=0 // pred_region
    _
  $region29: #{encoder_forward.14} parent=0 // pred_fallthru
    _
  %v27 = vld [vmem:[%s0] sm:$0xff]
  %v28 = vld [vmem:[%s0 + $0x8] sm:$0xff]
  %v29 = vpack.c.bf16 %v28, %v27
  %v30 = vld [vmem:[%s1] sm:$0xf]
  %v31 = vld [vmem:[%s1 + $0x4] sm:$0xf]
  %v32 = vld [vmem:[%s1 + $0x8] sm:$0xf]
  %v33 = vld [vmem:[%s1 + $0xc] sm:$0xf]
  %v34 = vld [vmem:[%s2] sm:$0x1]
  %v36 = vperm.slane %v34, 0
  %v42 = vunpack.c.l.b16 %v30
  %v43 = vunpack.c.l.b16 %v31
  %v44 = vunpack.c.l.b16 %v32
  %v45 = vunpack.c.l.b16 %v33
  %v46 = vpack.c.b16 %v43, %v42
  %v47 = vpack.c.b16 %v45, %v44
  %vm50 = vcmask 261120
  %v52 = vsel %vm50, %v29, 0
  %54 = vmatpush.bf16.msra.mxu0 0
  %55 = vmatpush.bf16.msra.mxu0 0
  %56 = vmatpush.bf16.msra.mxu0 0
  %57 = vmatpush.bf16.msra.mxu0 0
  %58 = vmatpush.bf16.msra.mxu0 0
  %59 = vmatpush.bf16.msra.mxu0 0
  %60 = vmatpush.bf16.msra.mxu0 %v47
  %61 = vmatpush.bf16.msra.mxu0 %v46
  %62 = vmatmul.bf16.gmra.mxu0 %v52
  %v63 = vpop.f32.mrf.mxu0
  %v64 = vadd.f32 %v36, %v63
  %v65 = vpop.f32.mrf.mxu0
  %v66 = vadd.f32 %v36, %v65
  %67 = vdwg.mxu0
  %v68 = vmax.f32 %v64, 0.0
  %v69 = vmax.f32 %v66, 0.0
  %v70 = vpack.c.bf16 %v69, %v68
  %v71 = vld [vmem:[%s3] sm:$0xf]
  %v72 = vld [vmem:[%s3 + $0x4] sm:$0xf]
  %v73 = vld [vmem:[%s3 + $0x8] sm:$0xf]
  %v74 = vld [vmem:[%s3 + $0xc] sm:$0xf]
  %v75 = vld [vmem:[%s3 + $0x10] sm:$0xf]
  %v76 = vld [vmem:[%s3 + $0x14] sm:$0xf]
  %v77 = vld [vmem:[%s3 + $0x18] sm:$0xf]
  %v78 = vld [vmem:[%s3 + $0x1c] sm:$0xf]
  %v79 = vld [vmem:[%s4] sm:$0x1]
  %v81 = vperm.slane %v79, 0
  %v91 = vunpack.c.l.b16 %v71
  %v92 = vunpack.c.l.b16 %v72
  %v93 = vunpack.c.l.b16 %v73
  %v94 = vunpack.c.l.b16 %v74
  %v95 = vunpack.c.l.b16 %v75
  %v96 = vunpack.c.l.b16 %v76
  %v97 = vunpack.c.l.b16 %v77
  %v98 = vunpack.c.l.b16 %v78
  %v99 = vpack.c.b16 %v92, %v91
  %v100 = vpack.c.b16 %v94, %v93
  %v101 = vpack.c.b16 %v96, %v95
  %v102 = vpack.c.b16 %v98, %v97
  %vm107 = vcmask 523264
  %v109 = vsel %vm107, %v70, 0
  %111 = vmatpush.bf16.msra.mxu0 0
  %112 = vmatpush.bf16.msra.mxu0 0
  %113 = vmatpush.bf16.msra.mxu0 0
  %114 = vmatpush.bf16.msra.mxu0 0
  %115 = vmatpush.bf16.msra.mxu0 %v102
  %116 = vmatpush.bf16.msra.mxu0 %v101
  %117 = vmatpush.bf16.msra.mxu0 %v100
  %118 = vmatpush.bf16.msra.mxu0 %v99
  %119 = vmatmul.bf16.gmra.mxu0 %v109
  %v120 = vpop.f32.mrf.mxu0
  %v121 = vadd.f32 %v81, %v120
  %v122 = vpop.f32.mrf.mxu0
  %v123 = vadd.f32 %v81, %v122
  %124 = vdwg.mxu0
  %v125 = vadd.f32 %v27, %v121
  %v126 = vadd.f32 %v28, %v123
  %v127 = vsel %vm50, %v125, 0.0
  %128 = vadd.xlane.f32.xlu0 %v127
  %v129 = vpop.xlane.xlu0 %128
  %v130 = vsel %vm50, %v126, 0.0
  %131 = vadd.xlane.f32.xlu0 %v130
  %v132 = vpop.xlane.xlu0 %131
  %v133 = vrcp.pop 32.0
  %v134 = vmul.f32 32.0, %v133
  %v135 = vsub.f32 1.0, %v134
  %v136 = vmul.f32 %v133, %v135
  %v137 = vadd.f32 %v133, %v136
  %vm138 = vweird.f32 %v133
  %v139 = vsel %vm138, %v133, %v137
  %v140 = vmul.f32 %v129, %v139
  %v141 = vmul.f32 %v132, %v139
  %v142 = vsub.f32 %v125, %v140
  %v143 = vsub.f32 %v126, %v141
  %v144 = vmul.f32 %v142, %v142
  %v145 = vmul.f32 %v143, %v143
  %v146 = vsel %vm50, %v144, 0.0
  %147 = vadd.xlane.f32.xlu0 %v146
  %v148 = vpop.xlane.xlu0 %147
  %v149 = vsel %vm50, %v145, 0.0
  %150 = vadd.xlane.f32.xlu0 %v149
  %v151 = vpop.xlane.xlu0 %150
  %v152 = vmul.f32 %v148, %v139
  %v153 = vmul.f32 %v151, %v139
  %v154 = vadd.f32 %v152, 1e-05
  %v155 = vadd.f32 %v153, 1e-05
  %v156 = vrsqrt.pop %v154
  %v157 = vmul.f32 %v156, %v154
  %v158 = vmul.f32 %v157, %v156
  %v159 = vmul.f32 0.5, %v158
  %v160 = vsub.f32 1.5, %v159
  %v161 = vmul.f32 %v156, %v160
  %vm162 = vweird.f32 %v154
  %vm163 = vweird.f32 %v156
  %vm164 = vmor %vm162, %vm163
  %v165 = vsel %vm164, %v156, %v161
  %v166 = vrsqrt.pop %v155
  %v167 = vmul.f32 %v166, %v155
  %v168 = vmul.f32 %v167, %v166
  %v169 = vmul.f32 0.5, %v168
  %v170 = vsub.f32 1.5, %v169
  %v171 = vmul.f32 %v166, %v170
  %vm172 = vweird.f32 %v155
  %vm173 = vweird.f32 %v166
  %vm174 = vmor %vm172, %vm173
  %v175 = vsel %vm174, %v166, %v171
  %v176 = vmul.f32 %v142, %v165
  %v177 = vmul.f32 %v143, %v175
  %v178 = vld [vmem:[%s5] sm:$0x1]
  %v180 = vperm.slane %v178, 0
  %v182 = vmul.f32 %v176, %v180
  %v183 = vmul.f32 %v177, %v180
  %v184 = vld [vmem:[%s6] sm:$0x1]
  %v186 = vperm.slane %v184, 0
  %v188 = vadd.f32 %v182, %v186
  %v189 = vadd.f32 %v183, %v186
  %190 = vst.msk [vmem:[%s7] sm:$0xff] %vm50, %v188
  %191 = vst.msk [vmem:[%s7 + $0x8] sm:$0xff] %vm50, %v189
  // Predicated region
  $region30: #{encoder_forward.14} parent=0 // pred_check
    _
  $region31: #{encoder_forward.14} parent=0 // pred_check_branch
    %193 = sbr.rel (0) target = $region33
  $region32: #{encoder_forward.14} parent=0 // pred_region
    _
  $region33: #{encoder_forward.14} parent=0 // pred_fallthru
    _
  // Predicated region
  $region34: #{encoder_forward.14} parent=0 // pred_check
    _
  $region35: #{encoder_forward.14} parent=0 // pred_check_branch
    %195 = sbr.rel (0) target = $region37
  $region36: #{encoder_forward.14} parent=0 // pred_region
    _
  $region37: #{encoder_forward.14} parent=0 // pred_fallthru
    _

</llo_original>
